<compile_context>
chip_gen: v7x
topology: tpu7x:2x2x1
jax: 0.10.0
libtpu: 0.0.40
codegen_flags: <defaults>
</compile_context>

<pallas_src>
import jax
import jax.numpy as jnp
from jax.experimental import pallas as pl
from jax.experimental.pallas import tpu as pltpu

D_IN, D_H1, D_H2, D_OUT = 2016, 256, 50, 1
D_H2_PAD = 64            # 50 padded up to a full vreg lane half (zero-filled, exact)
MAX_TB = 1024            # batch tile cap; ~20 MiB VMEM at f32 x, fits every gen
BN_EPS = 1e-5


def _round_up(x, m):
    return ((x + m - 1) // m) * m


def _mlp_kernel(
    x_ref,            # (TB, 2016) f32   (cast to bf16 in-kernel)
    w1_ref, b1_ref,   # (2016, 256) bf16, (1, 256) f32
    w2_ref, b2_ref,   # (256, 64) bf16 (BN1 folded, zero-padded cols), (1, 64) f32
    w3_ref, b3_ref,   # (1, 64) f32 (BN2-folded W3 row, zero-padded), (1, 1) f32
    o_ref,            # (TB, 1) f32
):
    # layer_1 + ReLU  (BatchNorm1d(256) folded into W2/b2)
    x = x_ref[...].astype(jnp.bfloat16)
    h1 = jnp.dot(x, w1_ref[...], preferred_element_type=jnp.float32)
    h1 = jnp.maximum(h1 + b1_ref[...], 0.0)

    # layer_2 + ReLU  (BatchNorm1d(50) folded into W3/b3)
    h2 = jnp.dot(h1.astype(jnp.bfloat16), w2_ref[...],
                 preferred_element_type=jnp.float32)
    h2 = jnp.maximum(h2 + b2_ref[...], 0.0)

    # dropout(p=0.1) is identity in eval mode.
    # TODO(synk): training-mode dropout (pltpu.prng_random_bits mask) not emitted.

    # layer_out: N=1 matmul as VPU mul + lane reduction (skip empty MXU pass).
    # Padded lanes [50:64] are exactly zero in both h2 and w3_ref.
    o_ref[...] = jnp.sum(h2 * w3_ref[...], axis=-1, keepdims=True) + b3_ref[...]


def _resident_spec(shape):
    """Constant-index operand: stays VMEM-resident, single-buffered."""
    return pl.BlockSpec(shape, lambda i: (0,) * len(shape),
                        pipeline_mode=pl.Buffered(1))


@jax.jit
def binary_classification_forward(x, prepared_params):
    w1, b1, w2, b2, w3row, b3 = prepared_params
    B = x.shape[0]

    # Tile choice: as large as VMEM comfortably allows (HBM-BW / per-step-overhead
    # amortization), but keep >= 2 grid steps for large B so the "parallel" batch
    # axis can be sharded across both v7x TensorCores.
    tb = min(MAX_TB, _round_up(pl.cdiv(B, 2), 16))
    tb = min(max(tb, 8), _round_up(B, 8))
    grid = (pl.cdiv(B, tb),)

    flops = 2 * B * (D_IN * D_H1 + D_H1 * D_H2_PAD + D_H2_PAD)
    bytes_accessed = (
        x.size * x.dtype.itemsize
        + w1.size * w1.dtype.itemsize + b1.size * b1.dtype.itemsize
        + w2.size * w2.dtype.itemsize + b2.size * b2.dtype.itemsize
        + w3row.size * w3row.dtype.itemsize + b3.size * b3.dtype.itemsize
        + B * D_OUT * 4
    )

    out = pl.pallas_call(
        _mlp_kernel,
        out_shape=jax.ShapeDtypeStruct((B, D_OUT), jnp.float32),
        grid=grid,
        in_specs=[
            pl.BlockSpec((tb, D_IN), lambda i: (i, 0)),     # x tile (full-K block)
            _resident_spec((D_IN, D_H1)),                   # W1
            _resident_spec((1, D_H1)),                      # b1
            _resident_spec((D_H1, D_H2_PAD)),               # W2' (BN1 folded)
            _resident_spec((1, D_H2_PAD)),                  # b2'
            _resident_spec((1, D_H2_PAD)),                  # W3' row (BN2 folded)
            _resident_spec((1, 1)),                         # b3'
        ],
        out_specs=pl.BlockSpec((tb, D_OUT), lambda i: (i, 0)),
        compiler_params=pltpu.CompilerParams(
            dimension_semantics=("parallel",),
            vmem_limit_bytes=32 * 1024 * 1024),
        cost_estimate=pl.CostEstimate(
            flops=flops, transcendentals=0, bytes_accessed=bytes_accessed),
    )(x, w1, b1, w2, b2, w3row, b3)

    return out


def init_params(key):
    """Deterministic synthetic parameters (PyTorch-like uniform init)."""
    ks = jax.random.split(key, 16)

    def linear(kw, kb, fan_in, fan_out):
        bound = 1.0 / jnp.sqrt(float(fan_in))
        w = jax.random.uniform(kw, (fan_in, fan_out), jnp.float32, -bound, bound)
        b = jax.random.uniform(kb, (1, fan_out), jnp.float32, -bound, bound)
        return w, b

    w1, b1 = linear(ks[0], ks[1], D_IN, D_H1)
    w2, b2 = linear(ks[2], ks[3], D_H1, D_H2)
    w3, b3 = linear(ks[4], ks[5], D_H2, D_OUT)

    def bn_fold(kg, kb, km, kv, n):
        gamma = 1.0 + 0.1 * jax.random.normal(kg, (1, n), jnp.float32)
        beta = 0.1 * jax.random.normal(kb, (1, n), jnp.float32)
        running_mean = 0.1 * jax.random.normal(km, (1, n), jnp.float32)
        running_var = 1.0 + 0.1 * jax.random.uniform(kv, (1, n), jnp.float32)
        scale = gamma / jnp.sqrt(running_var + BN_EPS)
        shift = beta - running_mean * scale
        return scale, shift

    s1, t1 = bn_fold(ks[6], ks[7], ks[8], ks[9], D_H1)
    s2, t2 = bn_fold(ks[10], ks[11], ks[12], ks[13], D_H2)

    return (w1, b1, s1, t1, w2, b2, s2, t2, w3, b3)


def prepare_params(raw_params):
    """Fold eval-mode BN affines into the downstream Linears (exact algebra),
    zero-pad the hidden-2 width 50 -> 64, and cast hot weights to bf16."""
    (w1, b1, s1, t1, w2, b2, s2, t2, w3, b3) = raw_params

    # (h1*s1 + t1) @ W2 + b2  ==  h1 @ (diag(s1) W2) + (t1 @ W2 + b2)
    w2f = s1.reshape(-1, 1) * w2          # (256, 50)
    b2f = t1 @ w2 + b2                    # (1, 50)
    # (h2*s2 + t2) @ W3 + b3  ==  h2 @ (diag(s2) W3) + (t2 @ W3 + b3)
    w3f = s2.reshape(-1, 1) * w3          # (50, 1)
    b3f = t2 @ w3 + b3                    # (1, 1)

    pad2 = D_H2_PAD - D_H2
    w2p = jnp.pad(w2f, ((0, 0), (0, pad2)))                      # zero cols: exact
    b2p = jnp.pad(b2f, ((0, 0), (0, pad2)))
    w3row = jnp.pad(jnp.transpose(w3f), ((0, 0), (0, pad2)))     # (1, 64)

    return (
        w1.astype(jnp.bfloat16),          # (2016, 256), K left unpadded
        b1.astype(jnp.float32),
        w2p.astype(jnp.bfloat16),
        b2p.astype(jnp.float32),
        w3row.astype(jnp.float32),
        b3f.astype(jnp.float32),
    )


def reference_forward(x, raw_params):
    """Pure-JAX f32 reference with unfolded BN (eval semantics)."""
    (w1, b1, s1, t1, w2, b2, s2, t2, w3, b3) = raw_params
    h1 = jnp.maximum(x @ w1 + b1, 0.0) * s1 + t1
    h2 = jnp.maximum(h1 @ w2 + b2, 0.0) * s2 + t2
    return h2 @ w3 + b3


if __name__ == "__main__":
    key = jax.random.PRNGKey(0)
    k_x, k_p = jax.random.split(key)

    B = 8
    x = jax.random.normal(k_x, (B, D_IN), jnp.float32)
    raw_params = init_params(k_p)
    params = prepare_params(raw_params)

    out = binary_classification_forward(x, params)
    out = jax.block_until_ready(out)

    ref = reference_forward(x, raw_params)
    assert out.shape == (B, D_OUT)
    # bf16 weights/activations in the hot matmuls => loosened tolerance vs f32 ref.
    assert jnp.allclose(out, ref, atol=3e-2, rtol=3e-2), "mismatch vs reference"

    print("KERNEL_OK")
</pallas_src>

<mosaic_0001>
module attributes {stable_mosaic.version = 11 : i64} {
  func.func @_mlp_kernel(%arg0: i32, %arg1: memref<8x2016xf32, #tpu.memory_space<vmem>>, %arg2: memref<2016x256xbf16, #tpu.memory_space<vmem>>, %arg3: memref<1x256xf32, #tpu.memory_space<vmem>>, %arg4: memref<256x64xbf16, #tpu.memory_space<vmem>>, %arg5: memref<1x64xf32, #tpu.memory_space<vmem>>, %arg6: memref<1x64xf32, #tpu.memory_space<vmem>>, %arg7: memref<1x1xf32, #tpu.memory_space<vmem>>, %arg8: memref<8x1xf32, #tpu.memory_space<vmem>>) attributes {dimension_semantics = [#tpu.dimension_semantics<parallel>], iteration_bounds = array<i64: 1>, scalar_prefetch = 0 : i64, scratch_operands = 0 : i64, tpu.core_type = #tpu.core_type<tc>, window_params = [{transform_indices = @transform_0, window_bounds = array<i64: 8, 2016>}, {pipeline_mode = #tpu.pipeline_mode<synchronous>, transform_indices = @transform_1, window_bounds = array<i64: 2016, 256>}, {pipeline_mode = #tpu.pipeline_mode<synchronous>, transform_indices = @transform_2, window_bounds = array<i64: 1, 256>}, {pipeline_mode = #tpu.pipeline_mode<synchronous>, transform_indices = @transform_3, window_bounds = array<i64: 256, 64>}, {pipeline_mode = #tpu.pipeline_mode<synchronous>, transform_indices = @transform_4, window_bounds = array<i64: 1, 64>}, {pipeline_mode = #tpu.pipeline_mode<synchronous>, transform_indices = @transform_5, window_bounds = array<i64: 1, 64>}, {pipeline_mode = #tpu.pipeline_mode<synchronous>, transform_indices = @transform_6, window_bounds = array<i64: 1, 1>}, {transform_indices = @transform_7, window_bounds = array<i64: 8, 1>}]} {
    %c0 = arith.constant 0 : index
    %c0_0 = arith.constant 0 : index
    %0 = vector.load %arg1[%c0, %c0_0] : memref<8x2016xf32, #tpu.memory_space<vmem>>, vector<8x2016xf32>
    %1 = arith.truncf %0 : vector<8x2016xf32> to vector<8x2016xbf16>
    %c0_1 = arith.constant 0 : index
    %c0_2 = arith.constant 0 : index
    %2 = vector.load %arg2[%c0_1, %c0_2] : memref<2016x256xbf16, #tpu.memory_space<vmem>>, vector<2016x256xbf16>
    %cst = arith.constant dense<0.000000e+00> : vector<8x256xf32>
    %3 = tpu.matmul %1, %2, %cst {dimension_numbers = #tpu.dot_dimension_numbers<[1], [0], [0], [1], [0, 0, 1, 1], [], []>} : vector<8x2016xbf16>, vector<2016x256xbf16>, vector<8x256xf32> -> vector<8x256xf32>
    %c0_3 = arith.constant 0 : index
    %c0_4 = arith.constant 0 : index
    %4 = vector.load %arg3[%c0_3, %c0_4] : memref<1x256xf32, #tpu.memory_space<vmem>>, vector<1x256xf32>
    %5 = vector.broadcast %4 : vector<1x256xf32> to vector<8x256xf32>
    %6 = arith.addf %3, %5 : vector<8x256xf32>
    %cst_5 = arith.constant 0.000000e+00 : f32
    %7 = vector.broadcast %cst_5 : f32 to vector<8x256xf32>
    %8 = arith.maximumf %6, %7 : vector<8x256xf32>
    %9 = arith.truncf %8 : vector<8x256xf32> to vector<8x256xbf16>
    %c0_6 = arith.constant 0 : index
    %c0_7 = arith.constant 0 : index
    %10 = vector.load %arg4[%c0_6, %c0_7] : memref<256x64xbf16, #tpu.memory_space<vmem>>, vector<256x64xbf16>
    %cst_8 = arith.constant dense<0.000000e+00> : vector<8x64xf32>
    %11 = tpu.matmul %9, %10, %cst_8 {dimension_numbers = #tpu.dot_dimension_numbers<[1], [0], [0], [1], [0, 0, 1, 1], [], []>} : vector<8x256xbf16>, vector<256x64xbf16>, vector<8x64xf32> -> vector<8x64xf32>
    %c0_9 = arith.constant 0 : index
    %c0_10 = arith.constant 0 : index
    %12 = vector.load %arg5[%c0_9, %c0_10] : memref<1x64xf32, #tpu.memory_space<vmem>>, vector<1x64xf32>
    %13 = vector.broadcast %12 : vector<1x64xf32> to vector<8x64xf32>
    %14 = arith.addf %11, %13 : vector<8x64xf32>
    %cst_11 = arith.constant 0.000000e+00 : f32
    %15 = vector.broadcast %cst_11 : f32 to vector<8x64xf32>
    %16 = arith.maximumf %14, %15 : vector<8x64xf32>
    %c0_12 = arith.constant 0 : index
    %c0_13 = arith.constant 0 : index
    %17 = vector.load %arg6[%c0_12, %c0_13] : memref<1x64xf32, #tpu.memory_space<vmem>>, vector<1x64xf32>
    %18 = vector.broadcast %17 : vector<1x64xf32> to vector<8x64xf32>
    %19 = arith.mulf %16, %18 : vector<8x64xf32>
    %cst_14 = arith.constant dense<0.000000e+00> : vector<8xf32>
    %20 = vector.multi_reduction <add>, %19, %cst_14 [1] : vector<8x64xf32> to vector<8xf32>
    %21 = vector.shape_cast %20 : vector<8xf32> to vector<8x1xf32>
    %c0_15 = arith.constant 0 : index
    %c0_16 = arith.constant 0 : index
    %22 = vector.load %arg7[%c0_15, %c0_16] : memref<1x1xf32, #tpu.memory_space<vmem>>, vector<1x1xf32>
    %23 = vector.broadcast %22 : vector<1x1xf32> to vector<8x1xf32>
    %24 = arith.addf %21, %23 : vector<8x1xf32>
    %c0_17 = arith.constant 0 : index
    %c0_18 = arith.constant 0 : index
    %25 = vector.load %arg8[%c0_17, %c0_18] : memref<8x1xf32, #tpu.memory_space<vmem>>, vector<8x1xf32>
    tpu.vector_store %arg8[%c0_17, %c0_18], %24 {strides = array<i32>} : memref<8x1xf32, #tpu.memory_space<vmem>>, vector<8x1xf32>,
    return
  }
  func.func @transform_0(%arg0: i32) -> (i32, i32) {
    %c0_i32 = arith.constant 0 : i32
    %c0_i32_0 = arith.constant 0 : i32
    return %arg0, %c0_i32 : i32, i32
  }
  func.func @transform_1(%arg0: i32) -> (i32, i32) {
    %c0_i32 = arith.constant 0 : i32
    %c0_i32_0 = arith.constant 0 : i32
    %c0_i32_1 = arith.constant 0 : i32
    return %c0_i32, %c0_i32_0 : i32, i32
  }
  func.func @transform_2(%arg0: i32) -> (i32, i32) {
    %c0_i32 = arith.constant 0 : i32
    %c0_i32_0 = arith.constant 0 : i32
    %c0_i32_1 = arith.constant 0 : i32
    return %c0_i32, %c0_i32_0 : i32, i32
  }
  func.func @transform_3(%arg0: i32) -> (i32, i32) {
    %c0_i32 = arith.constant 0 : i32
    %c0_i32_0 = arith.constant 0 : i32
    %c0_i32_1 = arith.constant 0 : i32
    return %c0_i32, %c0_i32_0 : i32, i32
  }
  func.func @transform_4(%arg0: i32) -> (i32, i32) {
    %c0_i32 = arith.constant 0 : i32
    %c0_i32_0 = arith.constant 0 : i32
    %c0_i32_1 = arith.constant 0 : i32
    return %c0_i32, %c0_i32_0 : i32, i32
  }
  func.func @transform_5(%arg0: i32) -> (i32, i32) {
    %c0_i32 = arith.constant 0 : i32
    %c0_i32_0 = arith.constant 0 : i32
    %c0_i32_1 = arith.constant 0 : i32
    return %c0_i32, %c0_i32_0 : i32, i32
  }
  func.func @transform_6(%arg0: i32) -> (i32, i32) {
    %c0_i32 = arith.constant 0 : i32
    %c0_i32_0 = arith.constant 0 : i32
    %c0_i32_1 = arith.constant 0 : i32
    return %c0_i32, %c0_i32_0 : i32, i32
  }
  func.func @transform_7(%arg0: i32) -> (i32, i32) {
    %c0_i32 = arith.constant 0 : i32
    %c0_i32_0 = arith.constant 0 : i32
    return %arg0, %c0_i32 : i32, i32
  }
}

</mosaic_0001>

<llo_original>
// kernel: binary_classification_forward.1
$region0: #{binary_classification_forward.1}
  #allocation0 [shape = 'u32[]', space=smem, size = 0x4, offset = 0x4, fixed_abs, tag = 'smem constant byte address 0x4 - core index']
  #allocation1 [shape = 'u32[144,128]{1,0:T(1,128)}', space=vmem, size = 0x12000, scoped, tag = 'internal scratch']
  #allocation2 [shape = 'f32[1,1]{1,0:T(1,128)S(1)}', space=vmem, size = 0x200, scoped, tag = 'scoped memory for binary_classification_forward.1']
  %s0 = inlined_call_operand.vmem [shape: f32[8,2016], index: 0, kind: input, shape index: {}]
  %s1 = inlined_call_operand.hbm [shape: bf16[2016,256], index: 1, kind: input, shape index: {}]
  %s2 = inlined_call_operand.vmem [shape: f32[1,256], index: 2, kind: input, shape index: {}]
  %s3 = inlined_call_operand.vmem [shape: bf16[256,64], index: 3, kind: input, shape index: {}]
  %s4 = inlined_call_operand.vmem [shape: f32[1,64], index: 4, kind: input, shape index: {}]
  %s5 = inlined_call_operand.vmem [shape: f32[1,64], index: 5, kind: input, shape index: {}]
  %s6 = inlined_call_operand.<no memory space> [shape: f32[1,1], index: 6, kind: input, shape index: {}]
  %s7 = inlined_call_operand.vmem [shape: f32[8,1], index: 7, kind: output, shape index: {}]
  %s8 = sld [smem:[#allocation0]]
  $region42: #{binary_classification_forward.1} parent=0
    _
  %s10 = ssub.s32 1, %s8
  %s11 = scalar_select 0, %s10, %s8
  %v12 = vstv %s6
  %13 = vst [vmem:[#allocation2] sm:$0x1] %v12
  $region1: #{binary_classification_forward.1} parent=0
    #allocation3 [shape = 'u8[1032192]{0}', space=vmem, size = 0xfc000, scoped, tag = 'input window, operand 1, single buffered']
    #allocation4 [shape = 's32[1]{0}', space=sflag, size = 0x4, scoped, tag = 'scoped memory for binary_classification_forward.1']
    %14 = vsyncpa [#allocation4], 0
    // Predicated region
    $region2: #{binary_classification_forward.1} parent=1 // pred_check
      _
    $region3: #{binary_classification_forward.1} parent=1 // pred_check_branch
      %16 = sbr.rel (0) target = $region5
    $region4: #{binary_classification_forward.1} parent=1 // pred_region
      _
    $region5: #{binary_classification_forward.1} parent=1 // pred_fallthru
      _
    // Predicated region
    $region6: #{binary_classification_forward.1} parent=1 // pred_check
      _
    $region7: #{binary_classification_forward.1} parent=1 // pred_check_branch
      %18 = sbr.rel (0) target = $region9
    $region8: #{binary_classification_forward.1} parent=1 // pred_region
      %s20 = ssub.s32 32256, 32256
      %21 = vsyncadd [#allocation4], %s20
      %s22 = sshll.u32 [#allocation3], 4
      %s23 = int_to_ptr.vmem [resolvable:$true] %s22
      %28 = dma.hbm_to_vmem [thread:$0]  %s1, 32256, %s23, [#allocation4], 128, 128, 8
    $region9: #{binary_classification_forward.1} parent=1 // pred_fallthru
      _
    // Predicated region
    $region10: #{binary_classification_forward.1} parent=1 // pred_check
      _
    $region11: #{binary_classification_forward.1} parent=1 // pred_check_branch
      %30 = sbr.rel (0) target = $region13
    $region12: #{binary_classification_forward.1} parent=1 // pred_region
      _
    $region13: #{binary_classification_forward.1} parent=1 // pred_fallthru
      _
    // Predicated region
    $region14: #{binary_classification_forward.1} parent=1 // pred_check
      _
    $region15: #{binary_classification_forward.1} parent=1 // pred_check_branch
      %32 = sbr.rel (0) target = $region17
    $region16: #{binary_classification_forward.1} parent=1 // pred_region
      _
    $region17: #{binary_classification_forward.1} parent=1 // pred_fallthru
      _
    // Predicated region
    $region18: #{binary_classification_forward.1} parent=1 // pred_check
      _
    $region19: #{binary_classification_forward.1} parent=1 // pred_check_branch
      %34 = sbr.rel (0) target = $region21
    $region20: #{binary_classification_forward.1} parent=1 // pred_region
      _
    $region21: #{binary_classification_forward.1} parent=1 // pred_fallthru
      _
    // Predicated region
    $region22: #{binary_classification_forward.1} parent=1 // pred_check
      _
    $region23: #{binary_classification_forward.1} parent=1 // pred_check_branch
      %36 = sbr.rel (0) target = $region25
    $region24: #{binary_classification_forward.1} parent=1 // pred_region
      _
    $region25: #{binary_classification_forward.1} parent=1 // pred_fallthru
      _
    // Predicated region
    $region26: #{binary_classification_forward.1} parent=1 // pred_check
      _
    $region27: #{binary_classification_forward.1} parent=1 // pred_check_branch
      %38 = sbr.rel (0) target = $region29
    $region28: #{binary_classification_forward.1} parent=1 // pred_region
      _
    $region29: #{binary_classification_forward.1} parent=1 // pred_fallthru
      _
    // Predicated region
    $region30: #{binary_classification_forward.1} parent=1 // pred_check
      _
    $region31: #{binary_classification_forward.1} parent=1 // pred_check_branch
      %40 = sbr.rel (0) target = $region33
    $region32: #{binary_classification_forward.1} parent=1 // pred_region
      %41 = dma.done [#allocation4], 32256
    $region33: #{binary_classification_forward.1} parent=1 // pred_fallthru
      _
    %v43 = vld [vmem:[%s0] sm:$0xff]
    %v44 = vld [vmem:[%s0 + $0x8] sm:$0xff]
    %v45 = vld [vmem:[%s0 + $0x10] sm:$0xff]
    %v46 = vld [vmem:[%s0 + $0x18] sm:$0xff]
    %v47 = vld [vmem:[%s0 + $0x20] sm:$0xff]
    %v48 = vld [vmem:[%s0 + $0x28] sm:$0xff]
    %v49 = vld [vmem:[%s0 + $0x30] sm:$0xff]
    %v50 = vld [vmem:[%s0 + $0x38] sm:$0xff]
    %v51 = vld [vmem:[%s0 + $0x40] sm:$0xff]
    %v52 = vld [vmem:[%s0 + $0x48] sm:$0xff]
    %v53 = vld [vmem:[%s0 + $0x50] sm:$0xff]
    %v54 = vld [vmem:[%s0 + $0x58] sm:$0xff]
    %v55 = vld [vmem:[%s0 + $0x60] sm:$0xff]
    %v56 = vld [vmem:[%s0 + $0x68] sm:$0xff]
    %v57 = vld [vmem:[%s0 + $0x70] sm:$0xff]
    %v58 = vld [vmem:[%s0 + $0x78] sm:$0xff]
    %v59 = vpack.c.bf16 %v43, %v43
    %v60 = vpack.c.bf16 %v44, %v44
    %v61 = vpack.c.bf16 %v45, %v45
    %v62 = vpack.c.bf16 %v46, %v46
    %v63 = vpack.c.bf16 %v47, %v47
    %v64 = vpack.c.bf16 %v48, %v48
    %v65 = vpack.c.bf16 %v49, %v49
    %v66 = vpack.c.bf16 %v50, %v50
    %v67 = vpack.c.bf16 %v51, %v51
    %v68 = vpack.c.bf16 %v52, %v52
    %v69 = vpack.c.bf16 %v53, %v53
    %v70 = vpack.c.bf16 %v54, %v54
    %v71 = vpack.c.bf16 %v55, %v55
    %v72 = vpack.c.bf16 %v56, %v56
    %v73 = vpack.c.bf16 %v57, %v57
    %v74 = vpack.c.bf16 %v58, %v58
    %v75 = vld [vmem:[#allocation3] sm:$0xff]
    %v76 = vld [vmem:[#allocation3 + $0x8] sm:$0xff]
    %v77 = vld [vmem:[#allocation3 + $0x10] sm:$0xff]
    %v78 = vld [vmem:[#allocation3 + $0x18] sm:$0xff]
    %v79 = vld [vmem:[#allocation3 + $0x20] sm:$0xff]
    %v80 = vld [vmem:[#allocation3 + $0x28] sm:$0xff]
    %v81 = vld [vmem:[#allocation3 + $0x30] sm:$0xff]
    %v82 = vld [vmem:[#allocation3 + $0x38] sm:$0xff]
    %v83 = vld [vmem:[#allocation3 + $0x40] sm:$0xff]
    %v84 = vld [vmem:[#allocation3 + $0x48] sm:$0xff]
    %v85 = vld [vmem:[#allocation3 + $0x50] sm:$0xff]
    %v86 = vld [vmem:[#allocation3 + $0x58] sm:$0xff]
    %v87 = vld [vmem:[#allocation3 + $0x60] sm:$0xff]
    %v88 = vld [vmem:[#allocation3 + $0x68] sm:$0xff]
    %v89 = vld [vmem:[#allocation3 + $0x70] sm:$0xff]
    %v90 = vld [vmem:[#allocation3 + $0x78] sm:$0xff]
    %v91 = vld [vmem:[#allocation3 + $0x80] sm:$0xff]
    %v92 = vld [vmem:[#allocation3 + $0x88] sm:$0xff]
    %v93 = vld [vmem:[#allocation3 + $0x90] sm:$0xff]
    %v94 = vld [vmem:[#allocation3 + $0x98] sm:$0xff]
    %v95 = vld [vmem:[#allocation3 + $0xa0] sm:$0xff]
    %v96 = vld [vmem:[#allocation3 + $0xa8] sm:$0xff]
    %v97 = vld [vmem:[#allocation3 + $0xb0] sm:$0xff]
    %v98 = vld [vmem:[#allocation3 + $0xb8] sm:$0xff]
    %v99 = vld [vmem:[#allocation3 + $0xc0] sm:$0xff]
    %v100 = vld [vmem:[#allocation3 + $0xc8] sm:$0xff]
    %v101 = vld [vmem:[#allocation3 + $0xd0] sm:$0xff]
    %v102 = vld [vmem:[#allocation3 + $0xd8] sm:$0xff]
    %v103 = vld [vmem:[#allocation3 + $0xe0] sm:$0xff]
    %v104 = vld [vmem:[#allocation3 + $0xe8] sm:$0xff]
    %v105 = vld [vmem:[#allocation3 + $0xf0] sm:$0xff]
    %v106 = vld [vmem:[#allocation3 + $0xf8] sm:$0xff]
    %v107 = vld [vmem:[#allocation3 + $0x100] sm:$0xff]
    %v108 = vld [vmem:[#allocation3 + $0x108] sm:$0xff]
    %v109 = vld [vmem:[#allocation3 + $0x110] sm:$0xff]
    %v110 = vld [vmem:[#allocation3 + $0x118] sm:$0xff]
    %v111 = vld [vmem:[#allocation3 + $0x120] sm:$0xff]
    %v112 = vld [vmem:[#allocation3 + $0x128] sm:$0xff]
    %v113 = vld [vmem:[#allocation3 + $0x130] sm:$0xff]
    %v114 = vld [vmem:[#allocation3 + $0x138] sm:$0xff]
    %v115 = vld [vmem:[#allocation3 + $0x140] sm:$0xff]
    %v116 = vld [vmem:[#allocation3 + $0x148] sm:$0xff]
    %v117 = vld [vmem:[#allocation3 + $0x150] sm:$0xff]
    %v118 = vld [vmem:[#allocation3 + $0x158] sm:$0xff]
    %v119 = vld [vmem:[#allocation3 + $0x160] sm:$0xff]
    %v120 = vld [vmem:[#allocation3 + $0x168] sm:$0xff]
    %v121 = vld [vmem:[#allocation3 + $0x170] sm:$0xff]
    %v122 = vld [vmem:[#allocation3 + $0x178] sm:$0xff]
    %v123 = vld [vmem:[#allocation3 + $0x180] sm:$0xff]
    %v124 = vld [vmem:[#allocation3 + $0x188] sm:$0xff]
    %v125 = vld [vmem:[#allocation3 + $0x190] sm:$0xff]
    %v126 = vld [vmem:[#allocation3 + $0x198] sm:$0xff]
    %v127 = vld [vmem:[#allocation3 + $0x1a0] sm:$0xff]
    %v128 = vld [vmem:[#allocation3 + $0x1a8] sm:$0xff]
    %v129 = vld [vmem:[#allocation3 + $0x1b0] sm:$0xff]
    %v130 = vld [vmem:[#allocation3 + $0x1b8] sm:$0xff]
    %v131 = vld [vmem:[#allocation3 + $0x1c0] sm:$0xff]
    %v132 = vld [vmem:[#allocation3 + $0x1c8] sm:$0xff]
    %v133 = vld [vmem:[#allocation3 + $0x1d0] sm:$0xff]
    %v134 = vld [vmem:[#allocation3 + $0x1d8] sm:$0xff]
    %v135 = vld [vmem:[#allocation3 + $0x1e0] sm:$0xff]
    %v136 = vld [vmem:[#allocation3 + $0x1e8] sm:$0xff]
    %v137 = vld [vmem:[#allocation3 + $0x1f0] sm:$0xff]
    %v138 = vld [vmem:[#allocation3 + $0x1f8] sm:$0xff]
    %v139 = vld [vmem:[#allocation3 + $0x200] sm:$0xff]
    %v140 = vld [vmem:[#allocation3 + $0x208] sm:$0xff]
    %v141 = vld [vmem:[#allocation3 + $0x210] sm:$0xff]
    %v142 = vld [vmem:[#allocation3 + $0x218] sm:$0xff]
    %v143 = vld [vmem:[#allocation3 + $0x220] sm:$0xff]
    %v144 = vld [vmem:[#allocation3 + $0x228] sm:$0xff]
    %v145 = vld [vmem:[#allocation3 + $0x230] sm:$0xff]
    %v146 = vld [vmem:[#allocation3 + $0x238] sm:$0xff]
    %v147 = vld [vmem:[#allocation3 + $0x240] sm:$0xff]
    %v148 = vld [vmem:[#allocation3 + $0x248] sm:$0xff]
    %v149 = vld [vmem:[#allocation3 + $0x250] sm:$0xff]
    %v150 = vld [vmem:[#allocation3 + $0x258] sm:$0xff]
    %v151 = vld [vmem:[#allocation3 + $0x260] sm:$0xff]
    %v152 = vld [vmem:[#allocation3 + $0x268] sm:$0xff]
    %v153 = vld [vmem:[#allocation3 + $0x270] sm:$0xff]
    %v154 = vld [vmem:[#allocation3 + $0x278] sm:$0xff]
    %v155 = vld [vmem:[#allocation3 + $0x280] sm:$0xff]
    %v156 = vld [vmem:[#allocation3 + $0x288] sm:$0xff]
    %v157 = vld [vmem:[#allocation3 + $0x290] sm:$0xff]
    %v158 = vld [vmem:[#allocation3 + $0x298] sm:$0xff]
    %v159 = vld [vmem:[#allocation3 + $0x2a0] sm:$0xff]
    %v160 = vld [vmem:[#allocation3 + $0x2a8] sm:$0xff]
    %v161 = vld [vmem:[#allocation3 + $0x2b0] sm:$0xff]
    %v162 = vld [vmem:[#allocation3 + $0x2b8] sm:$0xff]
    %v163 = vld [vmem:[#allocation3 + $0x2c0] sm:$0xff]
    %v164 = vld [vmem:[#allocation3 + $0x2c8] sm:$0xff]
    %v165 = vld [vmem:[#allocation3 + $0x2d0] sm:$0xff]
    %v166 = vld [vmem:[#allocation3 + $0x2d8] sm:$0xff]
    %v167 = vld [vmem:[#allocation3 + $0x2e0] sm:$0xff]
    %v168 = vld [vmem:[#allocation3 + $0x2e8] sm:$0xff]
    %v169 = vld [vmem:[#allocation3 + $0x2f0] sm:$0xff]
    %v170 = vld [vmem:[#allocation3 + $0x2f8] sm:$0xff]
    %v171 = vld [vmem:[#allocation3 + $0x300] sm:$0xff]
    %v172 = vld [vmem:[#allocation3 + $0x308] sm:$0xff]
    %v173 = vld [vmem:[#allocation3 + $0x310] sm:$0xff]
    %v174 = vld [vmem:[#allocation3 + $0x318] sm:$0xff]
    %v175 = vld [vmem:[#allocation3 + $0x320] sm:$0xff]
    %v176 = vld [vmem:[#allocation3 + $0x328] sm:$0xff]
    %v177 = vld [vmem:[#allocation3 + $0x330] sm:$0xff]
    %v178 = vld [vmem:[#allocation3 + $0x338] sm:$0xff]
    %v179 = vld [vmem:[#allocation3 + $0x340] sm:$0xff]
    %v180 = vld [vmem:[#allocation3 + $0x348] sm:$0xff]
    %v181 = vld [vmem:[#allocation3 + $0x350] sm:$0xff]
    %v182 = vld [vmem:[#allocation3 + $0x358] sm:$0xff]
    %v183 = vld [vmem:[#allocation3 + $0x360] sm:$0xff]
    %v184 = vld [vmem:[#allocation3 + $0x368] sm:$0xff]
    %v185 = vld [vmem:[#allocation3 + $0x370] sm:$0xff]
    %v186 = vld [vmem:[#allocation3 + $0x378] sm:$0xff]
    %v187 = vld [vmem:[#allocation3 + $0x380] sm:$0xff]
    %v188 = vld [vmem:[#allocation3 + $0x388] sm:$0xff]
    %v189 = vld [vmem:[#allocation3 + $0x390] sm:$0xff]
    %v190 = vld [vmem:[#allocation3 + $0x398] sm:$0xff]
    %v191 = vld [vmem:[#allocation3 + $0x3a0] sm:$0xff]
    %v192 = vld [vmem:[#allocation3 + $0x3a8] sm:$0xff]
    %v193 = vld [vmem:[#allocation3 + $0x3b0] sm:$0xff]
    %v194 = vld [vmem:[#allocation3 + $0x3b8] sm:$0xff]
    %v195 = vld [vmem:[#allocation3 + $0x3c0] sm:$0xff]
    %v196 = vld [vmem:[#allocation3 + $0x3c8] sm:$0xff]
    %v197 = vld [vmem:[#allocation3 + $0x3d0] sm:$0xff]
    %v198 = vld [vmem:[#allocation3 + $0x3d8] sm:$0xff]
    %v199 = vld [vmem:[#allocation3 + $0x3e0] sm:$0xff]
    %v200 = vld [vmem:[#allocation3 + $0x3e8] sm:$0xff]
    %v201 = vld [vmem:[#allocation3 + $0x3f0] sm:$0xff]
    %v202 = vld [vmem:[#allocation3 + $0x3f8] sm:$0xff]
    %v203 = vld [vmem:[#allocation3 + $0x400] sm:$0xff]
    %v204 = vld [vmem:[#allocation3 + $0x408] sm:$0xff]
    %v205 = vld [vmem:[#allocation3 + $0x410] sm:$0xff]
    %v206 = vld [vmem:[#allocation3 + $0x418] sm:$0xff]
    %v207 = vld [vmem:[#allocation3 + $0x420] sm:$0xff]
    %v208 = vld [vmem:[#allocation3 + $0x428] sm:$0xff]
    %v209 = vld [vmem:[#allocation3 + $0x430] sm:$0xff]
    %v210 = vld [vmem:[#allocation3 + $0x438] sm:$0xff]
    %v211 = vld [vmem:[#allocation3 + $0x440] sm:$0xff]
    %v212 = vld [vmem:[#allocation3 + $0x448] sm:$0xff]
    %v213 = vld [vmem:[#allocation3 + $0x450] sm:$0xff]
    %v214 = vld [vmem:[#allocation3 + $0x458] sm:$0xff]
    %v215 = vld [vmem:[#allocation3 + $0x460] sm:$0xff]
    %v216 = vld [vmem:[#allocation3 + $0x468] sm:$0xff]
    %v217 = vld [vmem:[#allocation3 + $0x470] sm:$0xff]
    %v218 = vld [vmem:[#allocation3 + $0x478] sm:$0xff]
    %v219 = vld [vmem:[#allocation3 + $0x480] sm:$0xff]
    %v220 = vld [vmem:[#allocation3 + $0x488] sm:$0xff]
    %v221 = vld [vmem:[#allocation3 + $0x490] sm:$0xff]
    %v222 = vld [vmem:[#allocation3 + $0x498] sm:$0xff]
    %v223 = vld [vmem:[#allocation3 + $0x4a0] sm:$0xff]
    %v224 = vld [vmem:[#allocation3 + $0x4a8] sm:$0xff]
    %v225 = vld [vmem:[#allocation3 + $0x4b0] sm:$0xff]
    %v226 = vld [vmem:[#allocation3 + $0x4b8] sm:$0xff]
    %v227 = vld [vmem:[#allocation3 + $0x4c0] sm:$0xff]
    %v228 = vld [vmem:[#allocation3 + $0x4c8] sm:$0xff]
    %v229 = vld [vmem:[#allocation3 + $0x4d0] sm:$0xff]
    %v230 = vld [vmem:[#allocation3 + $0x4d8] sm:$0xff]
    %v231 = vld [vmem:[#allocation3 + $0x4e0] sm:$0xff]
    %v232 = vld [vmem:[#allocation3 + $0x4e8] sm:$0xff]
    %v233 = vld [vmem:[#allocation3 + $0x4f0] sm:$0xff]
    %v234 = vld [vmem:[#allocation3 + $0x4f8] sm:$0xff]
    %v235 = vld [vmem:[#allocation3 + $0x500] sm:$0xff]
    %v236 = vld [vmem:[#allocation3 + $0x508] sm:$0xff]
    %v237 = vld [vmem:[#allocation3 + $0x510] sm:$0xff]
    %v238 = vld [vmem:[#allocation3 + $0x518] sm:$0xff]
    %v239 = vld [vmem:[#allocation3 + $0x520] sm:$0xff]
    %v240 = vld [vmem:[#allocation3 + $0x528] sm:$0xff]
    %v241 = vld [vmem:[#allocation3 + $0x530] sm:$0xff]
    %v242 = vld [vmem:[#allocation3 + $0x538] sm:$0xff]
    %v243 = vld [vmem:[#allocation3 + $0x540] sm:$0xff]
    %v244 = vld [vmem:[#allocation3 + $0x548] sm:$0xff]
    %v245 = vld [vmem:[#allocation3 + $0x550] sm:$0xff]
    %v246 = vld [vmem:[#allocation3 + $0x558] sm:$0xff]
    %v247 = vld [vmem:[#allocation3 + $0x560] sm:$0xff]
    %v248 = vld [vmem:[#allocation3 + $0x568] sm:$0xff]
    %v249 = vld [vmem:[#allocation3 + $0x570] sm:$0xff]
    %v250 = vld [vmem:[#allocation3 + $0x578] sm:$0xff]
    %v251 = vld [vmem:[#allocation3 + $0x580] sm:$0xff]
    %v252 = vld [vmem:[#allocation3 + $0x588] sm:$0xff]
    %v253 = vld [vmem:[#allocation3 + $0x590] sm:$0xff]
    %v254 = vld [vmem:[#allocation3 + $0x598] sm:$0xff]
    %v255 = vld [vmem:[#allocation3 + $0x5a0] sm:$0xff]
    %v256 = vld [vmem:[#allocation3 + $0x5a8] sm:$0xff]
    %v257 = vld [vmem:[#allocation3 + $0x5b0] sm:$0xff]
    %v258 = vld [vmem:[#allocation3 + $0x5b8] sm:$0xff]
    %v259 = vld [vmem:[#allocation3 + $0x5c0] sm:$0xff]
    %v260 = vld [vmem:[#allocation3 + $0x5c8] sm:$0xff]
    %v261 = vld [vmem:[#allocation3 + $0x5d0] sm:$0xff]
    %v262 = vld [vmem:[#allocation3 + $0x5d8] sm:$0xff]
    %v263 = vld [vmem:[#allocation3 + $0x5e0] sm:$0xff]
    %v264 = vld [vmem:[#allocation3 + $0x5e8] sm:$0xff]
    %v265 = vld [vmem:[#allocation3 + $0x5f0] sm:$0xff]
    %v266 = vld [vmem:[#allocation3 + $0x5f8] sm:$0xff]
    %v267 = vld [vmem:[#allocation3 + $0x600] sm:$0xff]
    %v268 = vld [vmem:[#allocation3 + $0x608] sm:$0xff]
    %v269 = vld [vmem:[#allocation3 + $0x610] sm:$0xff]
    %v270 = vld [vmem:[#allocation3 + $0x618] sm:$0xff]
    %v271 = vld [vmem:[#allocation3 + $0x620] sm:$0xff]
    %v272 = vld [vmem:[#allocation3 + $0x628] sm:$0xff]
    %v273 = vld [vmem:[#allocation3 + $0x630] sm:$0xff]
    %v274 = vld [vmem:[#allocation3 + $0x638] sm:$0xff]
    %v275 = vld [vmem:[#allocation3 + $0x640] sm:$0xff]
    %v276 = vld [vmem:[#allocation3 + $0x648] sm:$0xff]
    %v277 = vld [vmem:[#allocation3 + $0x650] sm:$0xff]
    %v278 = vld [vmem:[#allocation3 + $0x658] sm:$0xff]
    %v279 = vld [vmem:[#allocation3 + $0x660] sm:$0xff]
    %v280 = vld [vmem:[#allocation3 + $0x668] sm:$0xff]
    %v281 = vld [vmem:[#allocation3 + $0x670] sm:$0xff]
    %v282 = vld [vmem:[#allocation3 + $0x678] sm:$0xff]
    %v283 = vld [vmem:[#allocation3 + $0x680] sm:$0xff]
    %v284 = vld [vmem:[#allocation3 + $0x688] sm:$0xff]
    %v285 = vld [vmem:[#allocation3 + $0x690] sm:$0xff]
    %v286 = vld [vmem:[#allocation3 + $0x698] sm:$0xff]
    %v287 = vld [vmem:[#allocation3 + $0x6a0] sm:$0xff]
    %v288 = vld [vmem:[#allocation3 + $0x6a8] sm:$0xff]
    %v289 = vld [vmem:[#allocation3 + $0x6b0] sm:$0xff]
    %v290 = vld [vmem:[#allocation3 + $0x6b8] sm:$0xff]
    %v291 = vld [vmem:[#allocation3 + $0x6c0] sm:$0xff]
    %v292 = vld [vmem:[#allocation3 + $0x6c8] sm:$0xff]
    %v293 = vld [vmem:[#allocation3 + $0x6d0] sm:$0xff]
    %v294 = vld [vmem:[#allocation3 + $0x6d8] sm:$0xff]
    %v295 = vld [vmem:[#allocation3 + $0x6e0] sm:$0xff]
    %v296 = vld [vmem:[#allocation3 + $0x6e8] sm:$0xff]
    %v297 = vld [vmem:[#allocation3 + $0x6f0] sm:$0xff]
    %v298 = vld [vmem:[#allocation3 + $0x6f8] sm:$0xff]
    %v299 = vld [vmem:[#allocation3 + $0x700] sm:$0xff]
    %v300 = vld [vmem:[#allocation3 + $0x708] sm:$0xff]
    %v301 = vld [vmem:[#allocation3 + $0x710] sm:$0xff]
    %v302 = vld [vmem:[#allocation3 + $0x718] sm:$0xff]
    %v303 = vld [vmem:[#allocation3 + $0x720] sm:$0xff]
    %v304 = vld [vmem:[#allocation3 + $0x728] sm:$0xff]
    %v305 = vld [vmem:[#allocation3 + $0x730] sm:$0xff]
    %v306 = vld [vmem:[#allocation3 + $0x738] sm:$0xff]
    %v307 = vld [vmem:[#allocation3 + $0x740] sm:$0xff]
    %v308 = vld [vmem:[#allocation3 + $0x748] sm:$0xff]
    %v309 = vld [vmem:[#allocation3 + $0x750] sm:$0xff]
    %v310 = vld [vmem:[#allocation3 + $0x758] sm:$0xff]
    %v311 = vld [vmem:[#allocation3 + $0x760] sm:$0xff]
    %v312 = vld [vmem:[#allocation3 + $0x768] sm:$0xff]
    %v313 = vld [vmem:[#allocation3 + $0x770] sm:$0xff]
    %v314 = vld [vmem:[#allocation3 + $0x778] sm:$0xff]
    %v315 = vld [vmem:[#allocation3 + $0x780] sm:$0xff]
    %v316 = vld [vmem:[#allocation3 + $0x788] sm:$0xff]
    %v317 = vld [vmem:[#allocation3 + $0x790] sm:$0xff]
    %v318 = vld [vmem:[#allocation3 + $0x798] sm:$0xff]
    %v319 = vld [vmem:[#allocation3 + $0x7a0] sm:$0xff]
    %v320 = vld [vmem:[#allocation3 + $0x7a8] sm:$0xff]
    %v321 = vld [vmem:[#allocation3 + $0x7b0] sm:$0xff]
    %v322 = vld [vmem:[#allocation3 + $0x7b8] sm:$0xff]
    %v323 = vld [vmem:[#allocation3 + $0x7c0] sm:$0xff]
    %v324 = vld [vmem:[#allocation3 + $0x7c8] sm:$0xff]
    %v325 = vld [vmem:[#allocation3 + $0x7d0] sm:$0xff]
    %v326 = vld [vmem:[#allocation3 + $0x7d8] sm:$0xff]
    %v327 = vld [vmem:[%s2] sm:$0x3]
    %v329 = vlaneseq
    %v330 = vshrl.u32 %v329, 7
    %v331 = vsub.s32 0, %v330
    %v332 = vrot.slane %v327, %v331
    %v333 = vlaneseq
    %v334 = vshrl.u32 %v333, 7
    %v335 = vsub.s32 1, %v334
    %v336 = vrot.slane %v327, %v335
    %v591 = vunpack.c.l.b16 %v75
    %v592 = vunpack.c.h.b16 %v75
    %v593 = vunpack.c.l.b16 %v76
    %v594 = vunpack.c.h.b16 %v76
    %v595 = vunpack.c.l.b16 %v77
    %v596 = vunpack.c.h.b16 %v77
    %v597 = vunpack.c.l.b16 %v78
    %v598 = vunpack.c.h.b16 %v78
    %v599 = vunpack.c.l.b16 %v79
    %v600 = vunpack.c.h.b16 %v79
    %v601 = vunpack.c.l.b16 %v80
    %v602 = vunpack.c.h.b16 %v80
    %v603 = vunpack.c.l.b16 %v81
    %v604 = vunpack.c.h.b16 %v81
    %v605 = vunpack.c.l.b16 %v82
    %v606 = vunpack.c.h.b16 %v82
    %v607 = vunpack.c.l.b16 %v83
    %v608 = vunpack.c.h.b16 %v83
    %v609 = vunpack.c.l.b16 %v84
    %v610 = vunpack.c.h.b16 %v84
    %v611 = vunpack.c.l.b16 %v85
    %v612 = vunpack.c.h.b16 %v85
    %v613 = vunpack.c.l.b16 %v86
    %v614 = vunpack.c.h.b16 %v86
    %v615 = vunpack.c.l.b16 %v87
    %v616 = vunpack.c.h.b16 %v87
    %v617 = vunpack.c.l.b16 %v88
    %v618 = vunpack.c.h.b16 %v88
    %v619 = vunpack.c.l.b16 %v89
    %v620 = vunpack.c.h.b16 %v89
    %v621 = vunpack.c.l.b16 %v90
    %v622 = vunpack.c.h.b16 %v90
    %v623 = vunpack.c.l.b16 %v91
    %v624 = vunpack.c.h.b16 %v91
    %v625 = vunpack.c.l.b16 %v92
    %v626 = vunpack.c.h.b16 %v92
    %v627 = vunpack.c.l.b16 %v93
    %v628 = vunpack.c.h.b16 %v93
    %v629 = vunpack.c.l.b16 %v94
    %v630 = vunpack.c.h.b16 %v94
    %v631 = vunpack.c.l.b16 %v95
    %v632 = vunpack.c.h.b16 %v95
    %v633 = vunpack.c.l.b16 %v96
    %v634 = vunpack.c.h.b16 %v96
    %v635 = vunpack.c.l.b16 %v97
    %v636 = vunpack.c.h.b16 %v97
    %v637 = vunpack.c.l.b16 %v98
    %v638 = vunpack.c.h.b16 %v98
    %v639 = vunpack.c.l.b16 %v99
    %v640 = vunpack.c.h.b16 %v99
    %v641 = vunpack.c.l.b16 %v100
    %v642 = vunpack.c.h.b16 %v100
    %v643 = vunpack.c.l.b16 %v101
    %v644 = vunpack.c.h.b16 %v101
    %v645 = vunpack.c.l.b16 %v102
    %v646 = vunpack.c.h.b16 %v102
    %v647 = vunpack.c.l.b16 %v103
    %v648 = vunpack.c.h.b16 %v103
    %v649 = vunpack.c.l.b16 %v104
    %v650 = vunpack.c.h.b16 %v104
    %v651 = vunpack.c.l.b16 %v105
    %v652 = vunpack.c.h.b16 %v105
    %v653 = vunpack.c.l.b16 %v106
    %v654 = vunpack.c.h.b16 %v106
    %v655 = vunpack.c.l.b16 %v107
    %v656 = vunpack.c.h.b16 %v107
    %v657 = vunpack.c.l.b16 %v108
    %v658 = vunpack.c.h.b16 %v108
    %v659 = vunpack.c.l.b16 %v109
    %v660 = vunpack.c.h.b16 %v109
    %v661 = vunpack.c.l.b16 %v110
    %v662 = vunpack.c.h.b16 %v110
    %v663 = vunpack.c.l.b16 %v111
    %v664 = vunpack.c.h.b16 %v111
    %v665 = vunpack.c.l.b16 %v112
    %v666 = vunpack.c.h.b16 %v112
    %v667 = vunpack.c.l.b16 %v113
    %v668 = vunpack.c.h.b16 %v113
    %v669 = vunpack.c.l.b16 %v114
    %v670 = vunpack.c.h.b16 %v114
    %v671 = vunpack.c.l.b16 %v115
    %v672 = vunpack.c.h.b16 %v115
    %v673 = vunpack.c.l.b16 %v116
    %v674 = vunpack.c.h.b16 %v116
    %v675 = vunpack.c.l.b16 %v117
    %v676 = vunpack.c.h.b16 %v117
    %v677 = vunpack.c.l.b16 %v118
    %v678 = vunpack.c.h.b16 %v118
    %v679 = vunpack.c.l.b16 %v119
    %v680 = vunpack.c.h.b16 %v119
    %v681 = vunpack.c.l.b16 %v120
    %v682 = vunpack.c.h.b16 %v120
    %v683 = vunpack.c.l.b16 %v121
    %v684 = vunpack.c.h.b16 %v121
    %v685 = vunpack.c.l.b16 %v122
    %v686 = vunpack.c.h.b16 %v122
    %v687 = vunpack.c.l.b16 %v123
    %v688 = vunpack.c.h.b16 %v123
    %v689 = vunpack.c.l.b16 %v124
    %v690 = vunpack.c.h.b16 %v124
    %v691 = vunpack.c.l.b16 %v125
    %v692 = vunpack.c.h.b16 %v125
    %v693 = vunpack.c.l.b16 %v126
    %v694 = vunpack.c.h.b16 %v126
    %v695 = vunpack.c.l.b16 %v127
    %v696 = vunpack.c.h.b16 %v127
    %v697 = vunpack.c.l.b16 %v128
    %v698 = vunpack.c.h.b16 %v128
    %v699 = vunpack.c.l.b16 %v129
    %v700 = vunpack.c.h.b16 %v129
    %v701 = vunpack.c.l.b16 %v130
    %v702 = vunpack.c.h.b16 %v130
    %v703 = vunpack.c.l.b16 %v131
    %v704 = vunpack.c.h.b16 %v131
    %v705 = vunpack.c.l.b16 %v132
    %v706 = vunpack.c.h.b16 %v132
    %v707 = vunpack.c.l.b16 %v133
    %v708 = vunpack.c.h.b16 %v133
    %v709 = vunpack.c.l.b16 %v134
    %v710 = vunpack.c.h.b16 %v134
    %v711 = vunpack.c.l.b16 %v135
    %v712 = vunpack.c.h.b16 %v135
    %v713 = vunpack.c.l.b16 %v136
    %v714 = vunpack.c.h.b16 %v136
    %v715 = vunpack.c.l.b16 %v137
    %v716 = vunpack.c.h.b16 %v137
    %v717 = vunpack.c.l.b16 %v138
    %v718 = vunpack.c.h.b16 %v138
    %v719 = vunpack.c.l.b16 %v139
    %v720 = vunpack.c.h.b16 %v139
    %v721 = vunpack.c.l.b16 %v140
    %v722 = vunpack.c.h.b16 %v140
    %v723 = vunpack.c.l.b16 %v141
    %v724 = vunpack.c.h.b16 %v141
    %v725 = vunpack.c.l.b16 %v142
    %v726 = vunpack.c.h.b16 %v142
    %v727 = vunpack.c.l.b16 %v143
    %v728 = vunpack.c.h.b16 %v143
    %v729 = vunpack.c.l.b16 %v144
    %v730 = vunpack.c.h.b16 %v144
    %v731 = vunpack.c.l.b16 %v145
    %v732 = vunpack.c.h.b16 %v145
    %v733 = vunpack.c.l.b16 %v146
    %v734 = vunpack.c.h.b16 %v146
    %v735 = vunpack.c.l.b16 %v147
    %v736 = vunpack.c.h.b16 %v147
    %v737 = vunpack.c.l.b16 %v148
    %v738 = vunpack.c.h.b16 %v148
    %v739 = vunpack.c.l.b16 %v149
    %v740 = vunpack.c.h.b16 %v149
    %v741 = vunpack.c.l.b16 %v150
    %v742 = vunpack.c.h.b16 %v150
    %v743 = vunpack.c.l.b16 %v151
    %v744 = vunpack.c.h.b16 %v151
    %v745 = vunpack.c.l.b16 %v152
    %v746 = vunpack.c.h.b16 %v152
    %v747 = vunpack.c.l.b16 %v153
    %v748 = vunpack.c.h.b16 %v153
    %v749 = vunpack.c.l.b16 %v154
    %v750 = vunpack.c.h.b16 %v154
    %v751 = vunpack.c.l.b16 %v155
    %v752 = vunpack.c.h.b16 %v155
    %v753 = vunpack.c.l.b16 %v156
    %v754 = vunpack.c.h.b16 %v156
    %v755 = vunpack.c.l.b16 %v157
    %v756 = vunpack.c.h.b16 %v157
    %v757 = vunpack.c.l.b16 %v158
    %v758 = vunpack.c.h.b16 %v158
    %v759 = vunpack.c.l.b16 %v159
    %v760 = vunpack.c.h.b16 %v159
    %v761 = vunpack.c.l.b16 %v160
    %v762 = vunpack.c.h.b16 %v160
    %v763 = vunpack.c.l.b16 %v161
    %v764 = vunpack.c.h.b16 %v161
    %v765 = vunpack.c.l.b16 %v162
    %v766 = vunpack.c.h.b16 %v162
    %v767 = vunpack.c.l.b16 %v163
    %v768 = vunpack.c.h.b16 %v163
    %v769 = vunpack.c.l.b16 %v164
    %v770 = vunpack.c.h.b16 %v164
    %v771 = vunpack.c.l.b16 %v165
    %v772 = vunpack.c.h.b16 %v165
    %v773 = vunpack.c.l.b16 %v166
    %v774 = vunpack.c.h.b16 %v166
    %v775 = vunpack.c.l.b16 %v167
    %v776 = vunpack.c.h.b16 %v167
    %v777 = vunpack.c.l.b16 %v168
    %v778 = vunpack.c.h.b16 %v168
    %v779 = vunpack.c.l.b16 %v169
    %v780 = vunpack.c.h.b16 %v169
    %v781 = vunpack.c.l.b16 %v170
    %v782 = vunpack.c.h.b16 %v170
    %v783 = vunpack.c.l.b16 %v171
    %v784 = vunpack.c.h.b16 %v171
    %v785 = vunpack.c.l.b16 %v172
    %v786 = vunpack.c.h.b16 %v172
    %v787 = vunpack.c.l.b16 %v173
    %v788 = vunpack.c.h.b16 %v173
    %v789 = vunpack.c.l.b16 %v174
    %v790 = vunpack.c.h.b16 %v174
    %v791 = vunpack.c.l.b16 %v175
    %v792 = vunpack.c.h.b16 %v175
    %v793 = vunpack.c.l.b16 %v176
    %v794 = vunpack.c.h.b16 %v176
    %v795 = vunpack.c.l.b16 %v177
    %v796 = vunpack.c.h.b16 %v177
    %v797 = vunpack.c.l.b16 %v178
    %v798 = vunpack.c.h.b16 %v178
    %v799 = vunpack.c.l.b16 %v179
    %v800 = vunpack.c.h.b16 %v179
    %v801 = vunpack.c.l.b16 %v180
    %v802 = vunpack.c.h.b16 %v180
    %v803 = vunpack.c.l.b16 %v181
    %v804 = vunpack.c.h.b16 %v181
    %v805 = vunpack.c.l.b16 %v182
    %v806 = vunpack.c.h.b16 %v182
    %v807 = vunpack.c.l.b16 %v183
    %v808 = vunpack.c.h.b16 %v183
    %v809 = vunpack.c.l.b16 %v184
    %v810 = vunpack.c.h.b16 %v184
    %v811 = vunpack.c.l.b16 %v185
    %v812 = vunpack.c.h.b16 %v185
    %v813 = vunpack.c.l.b16 %v186
    %v814 = vunpack.c.h.b16 %v186
    %v815 = vunpack.c.l.b16 %v187
    %v816 = vunpack.c.h.b16 %v187
    %v817 = vunpack.c.l.b16 %v188
    %v818 = vunpack.c.h.b16 %v188
    %v819 = vunpack.c.l.b16 %v189
    %v820 = vunpack.c.h.b16 %v189
    %v821 = vunpack.c.l.b16 %v190
    %v822 = vunpack.c.h.b16 %v190
    %v823 = vunpack.c.l.b16 %v191
    %v824 = vunpack.c.h.b16 %v191
    %v825 = vunpack.c.l.b16 %v192
    %v826 = vunpack.c.h.b16 %v192
    %v827 = vunpack.c.l.b16 %v193
    %v828 = vunpack.c.h.b16 %v193
    %v829 = vunpack.c.l.b16 %v194
    %v830 = vunpack.c.h.b16 %v194
    %v831 = vunpack.c.l.b16 %v195
    %v832 = vunpack.c.h.b16 %v195
    %v833 = vunpack.c.l.b16 %v196
    %v834 = vunpack.c.h.b16 %v196
    %v835 = vunpack.c.l.b16 %v197
    %v836 = vunpack.c.h.b16 %v197
    %v837 = vunpack.c.l.b16 %v198
    %v838 = vunpack.c.h.b16 %v198
    %v839 = vunpack.c.l.b16 %v199
    %v840 = vunpack.c.h.b16 %v199
    %v841 = vunpack.c.l.b16 %v200
    %v842 = vunpack.c.h.b16 %v200
    %v843 = vunpack.c.l.b16 %v201
    %v844 = vunpack.c.h.b16 %v201
    %v845 = vunpack.c.l.b16 %v202
    %v846 = vunpack.c.h.b16 %v202
    %v847 = vunpack.c.l.b16 %v203
    %v848 = vunpack.c.h.b16 %v203
    %v849 = vunpack.c.l.b16 %v204
    %v850 = vunpack.c.h.b16 %v204
    %v851 = vunpack.c.l.b16 %v205
    %v852 = vunpack.c.h.b16 %v205
    %v853 = vunpack.c.l.b16 %v206
    %v854 = vunpack.c.h.b16 %v206
    %v855 = vunpack.c.l.b16 %v207
    %v856 = vunpack.c.h.b16 %v207
    %v857 = vunpack.c.l.b16 %v208
    %v858 = vunpack.c.h.b16 %v208
    %v859 = vunpack.c.l.b16 %v209
    %v860 = vunpack.c.h.b16 %v209
    %v861 = vunpack.c.l.b16 %v210
    %v862 = vunpack.c.h.b16 %v210
    %v863 = vunpack.c.l.b16 %v211
    %v864 = vunpack.c.h.b16 %v211
    %v865 = vunpack.c.l.b16 %v212
    %v866 = vunpack.c.h.b16 %v212
    %v867 = vunpack.c.l.b16 %v213
    %v868 = vunpack.c.h.b16 %v213
    %v869 = vunpack.c.l.b16 %v214
    %v870 = vunpack.c.h.b16 %v214
    %v871 = vunpack.c.l.b16 %v215
    %v872 = vunpack.c.h.b16 %v215
    %v873 = vunpack.c.l.b16 %v216
    %v874 = vunpack.c.h.b16 %v216
    %v875 = vunpack.c.l.b16 %v217
    %v876 = vunpack.c.h.b16 %v217
    %v877 = vunpack.c.l.b16 %v218
    %v878 = vunpack.c.h.b16 %v218
    %v879 = vunpack.c.l.b16 %v219
    %v880 = vunpack.c.h.b16 %v219
    %v881 = vunpack.c.l.b16 %v220
    %v882 = vunpack.c.h.b16 %v220
    %v883 = vunpack.c.l.b16 %v221
    %v884 = vunpack.c.h.b16 %v221
    %v885 = vunpack.c.l.b16 %v222
    %v886 = vunpack.c.h.b16 %v222
    %v887 = vunpack.c.l.b16 %v223
    %v888 = vunpack.c.h.b16 %v223
    %v889 = vunpack.c.l.b16 %v224
    %v890 = vunpack.c.h.b16 %v224
    %v891 = vunpack.c.l.b16 %v225
    %v892 = vunpack.c.h.b16 %v225
    %v893 = vunpack.c.l.b16 %v226
    %v894 = vunpack.c.h.b16 %v226
    %v895 = vunpack.c.l.b16 %v227
    %v896 = vunpack.c.h.b16 %v227
    %v897 = vunpack.c.l.b16 %v228
    %v898 = vunpack.c.h.b16 %v228
    %v899 = vunpack.c.l.b16 %v229
    %v900 = vunpack.c.h.b16 %v229
    %v901 = vunpack.c.l.b16 %v230
    %v902 = vunpack.c.h.b16 %v230
    %v903 = vunpack.c.l.b16 %v231
    %v904 = vunpack.c.h.b16 %v231
    %v905 = vunpack.c.l.b16 %v232
    %v906 = vunpack.c.h.b16 %v232
    %v907 = vunpack.c.l.b16 %v233
    %v908 = vunpack.c.h.b16 %v233
    %v909 = vunpack.c.l.b16 %v234
    %v910 = vunpack.c.h.b16 %v234
    %v911 = vunpack.c.l.b16 %v235
    %v912 = vunpack.c.h.b16 %v235
    %v913 = vunpack.c.l.b16 %v236
    %v914 = vunpack.c.h.b16 %v236
    %v915 = vunpack.c.l.b16 %v237
    %v916 = vunpack.c.h.b16 %v237
    %v917 = vunpack.c.l.b16 %v238
    %v918 = vunpack.c.h.b16 %v238
    %v919 = vunpack.c.l.b16 %v239
    %v920 = vunpack.c.h.b16 %v239
    %v921 = vunpack.c.l.b16 %v240
    %v922 = vunpack.c.h.b16 %v240
    %v923 = vunpack.c.l.b16 %v241
    %v924 = vunpack.c.h.b16 %v241
    %v925 = vunpack.c.l.b16 %v242
    %v926 = vunpack.c.h.b16 %v242
    %v927 = vunpack.c.l.b16 %v243
    %v928 = vunpack.c.h.b16 %v243
    %v929 = vunpack.c.l.b16 %v244
    %v930 = vunpack.c.h.b16 %v244
    %v931 = vunpack.c.l.b16 %v245
    %v932 = vunpack.c.h.b16 %v245
    %v933 = vunpack.c.l.b16 %v246
    %v934 = vunpack.c.h.b16 %v246
    %v935 = vunpack.c.l.b16 %v247
    %v936 = vunpack.c.h.b16 %v247
    %v937 = vunpack.c.l.b16 %v248
    %v938 = vunpack.c.h.b16 %v248
    %v939 = vunpack.c.l.b16 %v249
    %v940 = vunpack.c.h.b16 %v249
    %v941 = vunpack.c.l.b16 %v250
    %v942 = vunpack.c.h.b16 %v250
    %v943 = vunpack.c.l.b16 %v251
    %v944 = vunpack.c.h.b16 %v251
    %v945 = vunpack.c.l.b16 %v252
    %v946 = vunpack.c.h.b16 %v252
    %v947 = vunpack.c.l.b16 %v253
    %v948 = vunpack.c.h.b16 %v253
    %v949 = vunpack.c.l.b16 %v254
    %v950 = vunpack.c.h.b16 %v254
    %v951 = vunpack.c.l.b16 %v255
    %v952 = vunpack.c.h.b16 %v255
    %v953 = vunpack.c.l.b16 %v256
    %v954 = vunpack.c.h.b16 %v256
    %v955 = vunpack.c.l.b16 %v257
    %v956 = vunpack.c.h.b16 %v257
    %v957 = vunpack.c.l.b16 %v258
    %v958 = vunpack.c.h.b16 %v258
    %v959 = vunpack.c.l.b16 %v259
    %v960 = vunpack.c.h.b16 %v259
    %v961 = vunpack.c.l.b16 %v260
    %v962 = vunpack.c.h.b16 %v260
    %v963 = vunpack.c.l.b16 %v261
    %v964 = vunpack.c.h.b16 %v261
    %v965 = vunpack.c.l.b16 %v262
    %v966 = vunpack.c.h.b16 %v262
    %v967 = vunpack.c.l.b16 %v263
    %v968 = vunpack.c.h.b16 %v263
    %v969 = vunpack.c.l.b16 %v264
    %v970 = vunpack.c.h.b16 %v264
    %v971 = vunpack.c.l.b16 %v265
    %v972 = vunpack.c.h.b16 %v265
    %v973 = vunpack.c.l.b16 %v266
    %v974 = vunpack.c.h.b16 %v266
    %v975 = vunpack.c.l.b16 %v267
    %v976 = vunpack.c.h.b16 %v267
    %v977 = vunpack.c.l.b16 %v268
    %v978 = vunpack.c.h.b16 %v268
    %v979 = vunpack.c.l.b16 %v269
    %v980 = vunpack.c.h.b16 %v269
    %v981 = vunpack.c.l.b16 %v270
    %v982 = vunpack.c.h.b16 %v270
    %v983 = vunpack.c.l.b16 %v271
    %v984 = vunpack.c.h.b16 %v271
    %v985 = vunpack.c.l.b16 %v272
    %v986 = vunpack.c.h.b16 %v272
    %v987 = vunpack.c.l.b16 %v273
    %v988 = vunpack.c.h.b16 %v273
    %v989 = vunpack.c.l.b16 %v274
    %v990 = vunpack.c.h.b16 %v274
    %v991 = vunpack.c.l.b16 %v275
    %v992 = vunpack.c.h.b16 %v275
    %v993 = vunpack.c.l.b16 %v276
    %v994 = vunpack.c.h.b16 %v276
    %v995 = vunpack.c.l.b16 %v277
    %v996 = vunpack.c.h.b16 %v277
    %v997 = vunpack.c.l.b16 %v278
    %v998 = vunpack.c.h.b16 %v278
    %v999 = vunpack.c.l.b16 %v279
    %v1000 = vunpack.c.h.b16 %v279
    %v1001 = vunpack.c.l.b16 %v280
    %v1002 = vunpack.c.h.b16 %v280
    %v1003 = vunpack.c.l.b16 %v281
    %v1004 = vunpack.c.h.b16 %v281
    %v1005 = vunpack.c.l.b16 %v282
    %v1006 = vunpack.c.h.b16 %v282
    %v1007 = vunpack.c.l.b16 %v283
    %v1008 = vunpack.c.h.b16 %v283
    %v1009 = vunpack.c.l.b16 %v284
    %v1010 = vunpack.c.h.b16 %v284
    %v1011 = vunpack.c.l.b16 %v285
    %v1012 = vunpack.c.h.b16 %v285
    %v1013 = vunpack.c.l.b16 %v286
    %v1014 = vunpack.c.h.b16 %v286
    %v1015 = vunpack.c.l.b16 %v287
    %v1016 = vunpack.c.h.b16 %v287
    %v1017 = vunpack.c.l.b16 %v288
    %v1018 = vunpack.c.h.b16 %v288
    %v1019 = vunpack.c.l.b16 %v289
    %v1020 = vunpack.c.h.b16 %v289
    %v1021 = vunpack.c.l.b16 %v290
    %v1022 = vunpack.c.h.b16 %v290
    %v1023 = vunpack.c.l.b16 %v291
    %v1024 = vunpack.c.h.b16 %v291
    %v1025 = vunpack.c.l.b16 %v292
    %v1026 = vunpack.c.h.b16 %v292
    %v1027 = vunpack.c.l.b16 %v293
    %v1028 = vunpack.c.h.b16 %v293
    %v1029 = vunpack.c.l.b16 %v294
    %v1030 = vunpack.c.h.b16 %v294
    %v1031 = vunpack.c.l.b16 %v295
    %v1032 = vunpack.c.h.b16 %v295
    %v1033 = vunpack.c.l.b16 %v296
    %v1034 = vunpack.c.h.b16 %v296
    %v1035 = vunpack.c.l.b16 %v297
    %v1036 = vunpack.c.h.b16 %v297
    %v1037 = vunpack.c.l.b16 %v298
    %v1038 = vunpack.c.h.b16 %v298
    %v1039 = vunpack.c.l.b16 %v299
    %v1040 = vunpack.c.h.b16 %v299
    %v1041 = vunpack.c.l.b16 %v300
    %v1042 = vunpack.c.h.b16 %v300
    %v1043 = vunpack.c.l.b16 %v301
    %v1044 = vunpack.c.h.b16 %v301
    %v1045 = vunpack.c.l.b16 %v302
    %v1046 = vunpack.c.h.b16 %v302
    %v1047 = vunpack.c.l.b16 %v303
    %v1048 = vunpack.c.h.b16 %v303
    %v1049 = vunpack.c.l.b16 %v304
    %v1050 = vunpack.c.h.b16 %v304
    %v1051 = vunpack.c.l.b16 %v305
    %v1052 = vunpack.c.h.b16 %v305
    %v1053 = vunpack.c.l.b16 %v306
    %v1054 = vunpack.c.h.b16 %v306
    %v1055 = vunpack.c.l.b16 %v307
    %v1056 = vunpack.c.h.b16 %v307
    %v1057 = vunpack.c.l.b16 %v308
    %v1058 = vunpack.c.h.b16 %v308
    %v1059 = vunpack.c.l.b16 %v309
    %v1060 = vunpack.c.h.b16 %v309
    %v1061 = vunpack.c.l.b16 %v310
    %v1062 = vunpack.c.h.b16 %v310
    %v1063 = vunpack.c.l.b16 %v311
    %v1064 = vunpack.c.h.b16 %v311
    %v1065 = vunpack.c.l.b16 %v312
    %v1066 = vunpack.c.h.b16 %v312
    %v1067 = vunpack.c.l.b16 %v313
    %v1068 = vunpack.c.h.b16 %v313
    %v1069 = vunpack.c.l.b16 %v314
    %v1070 = vunpack.c.h.b16 %v314
    %v1071 = vunpack.c.l.b16 %v315
    %v1072 = vunpack.c.h.b16 %v315
    %v1073 = vunpack.c.l.b16 %v316
    %v1074 = vunpack.c.h.b16 %v316
    %v1075 = vunpack.c.l.b16 %v317
    %v1076 = vunpack.c.h.b16 %v317
    %v1077 = vunpack.c.l.b16 %v318
    %v1078 = vunpack.c.h.b16 %v318
    %v1079 = vunpack.c.l.b16 %v319
    %v1080 = vunpack.c.h.b16 %v319
    %v1081 = vunpack.c.l.b16 %v320
    %v1082 = vunpack.c.h.b16 %v320
    %v1083 = vunpack.c.l.b16 %v321
    %v1084 = vunpack.c.h.b16 %v321
    %v1085 = vunpack.c.l.b16 %v322
    %v1086 = vunpack.c.h.b16 %v322
    %v1087 = vunpack.c.l.b16 %v323
    %v1088 = vunpack.c.h.b16 %v323
    %v1089 = vunpack.c.l.b16 %v324
    %v1090 = vunpack.c.h.b16 %v324
    %v1091 = vunpack.c.l.b16 %v325
    %v1092 = vunpack.c.h.b16 %v325
    %v1093 = vunpack.c.l.b16 %v326
    %v1094 = vunpack.c.h.b16 %v326
    %v1095 = vpack.c.b16 %v593, %v591
    %v1096 = vpack.c.b16 %v594, %v592
    %v1097 = vpack.c.b16 %v597, %v595
    %v1098 = vpack.c.b16 %v598, %v596
    %v1099 = vpack.c.b16 %v601, %v599
    %v1100 = vpack.c.b16 %v602, %v600
    %v1101 = vpack.c.b16 %v605, %v603
    %v1102 = vpack.c.b16 %v606, %v604
    %v1103 = vpack.c.b16 %v609, %v607
    %v1104 = vpack.c.b16 %v610, %v608
    %v1105 = vpack.c.b16 %v613, %v611
    %v1106 = vpack.c.b16 %v614, %v612
    %v1107 = vpack.c.b16 %v617, %v615
    %v1108 = vpack.c.b16 %v618, %v616
    %v1109 = vpack.c.b16 %v621, %v619
    %v1110 = vpack.c.b16 %v622, %v620
    %v1111 = vpack.c.b16 %v625, %v623
    %v1112 = vpack.c.b16 %v626, %v624
    %v1113 = vpack.c.b16 %v629, %v627
    %v1114 = vpack.c.b16 %v630, %v628
    %v1115 = vpack.c.b16 %v633, %v631
    %v1116 = vpack.c.b16 %v634, %v632
    %v1117 = vpack.c.b16 %v637, %v635
    %v1118 = vpack.c.b16 %v638, %v636
    %v1119 = vpack.c.b16 %v641, %v639
    %v1120 = vpack.c.b16 %v642, %v640
    %v1121 = vpack.c.b16 %v645, %v643
    %v1122 = vpack.c.b16 %v646, %v644
    %v1123 = vpack.c.b16 %v649, %v647
    %v1124 = vpack.c.b16 %v650, %v648
    %v1125 = vpack.c.b16 %v653, %v651
    %v1126 = vpack.c.b16 %v654, %v652
    %v1127 = vpack.c.b16 %v657, %v655
    %v1128 = vpack.c.b16 %v658, %v656
    %v1129 = vpack.c.b16 %v661, %v659
    %v1130 = vpack.c.b16 %v662, %v660
    %v1131 = vpack.c.b16 %v665, %v663
    %v1132 = vpack.c.b16 %v666, %v664
    %v1133 = vpack.c.b16 %v669, %v667
    %v1134 = vpack.c.b16 %v670, %v668
    %v1135 = vpack.c.b16 %v673, %v671
    %v1136 = vpack.c.b16 %v674, %v672
    %v1137 = vpack.c.b16 %v677, %v675
    %v1138 = vpack.c.b16 %v678, %v676
    %v1139 = vpack.c.b16 %v681, %v679
    %v1140 = vpack.c.b16 %v682, %v680
    %v1141 = vpack.c.b16 %v685, %v683
    %v1142 = vpack.c.b16 %v686, %v684
    %v1143 = vpack.c.b16 %v689, %v687
    %v1144 = vpack.c.b16 %v690, %v688
    %v1145 = vpack.c.b16 %v693, %v691
    %v1146 = vpack.c.b16 %v694, %v692
    %v1147 = vpack.c.b16 %v697, %v695
    %v1148 = vpack.c.b16 %v698, %v696
    %v1149 = vpack.c.b16 %v701, %v699
    %v1150 = vpack.c.b16 %v702, %v700
    %v1151 = vpack.c.b16 %v705, %v703
    %v1152 = vpack.c.b16 %v706, %v704
    %v1153 = vpack.c.b16 %v709, %v707
    %v1154 = vpack.c.b16 %v710, %v708
    %v1155 = vpack.c.b16 %v713, %v711
    %v1156 = vpack.c.b16 %v714, %v712
    %v1157 = vpack.c.b16 %v717, %v715
    %v1158 = vpack.c.b16 %v718, %v716
    %v1159 = vpack.c.b16 %v721, %v719
    %v1160 = vpack.c.b16 %v722, %v720
    %v1161 = vpack.c.b16 %v725, %v723
    %v1162 = vpack.c.b16 %v726, %v724
    %v1163 = vpack.c.b16 %v729, %v727
    %v1164 = vpack.c.b16 %v730, %v728
    %v1165 = vpack.c.b16 %v733, %v731
    %v1166 = vpack.c.b16 %v734, %v732
    %v1167 = vpack.c.b16 %v737, %v735
    %v1168 = vpack.c.b16 %v738, %v736
    %v1169 = vpack.c.b16 %v741, %v739
    %v1170 = vpack.c.b16 %v742, %v740
    %v1171 = vpack.c.b16 %v745, %v743
    %v1172 = vpack.c.b16 %v746, %v744
    %v1173 = vpack.c.b16 %v749, %v747
    %v1174 = vpack.c.b16 %v750, %v748
    %v1175 = vpack.c.b16 %v753, %v751
    %v1176 = vpack.c.b16 %v754, %v752
    %v1177 = vpack.c.b16 %v757, %v755
    %v1178 = vpack.c.b16 %v758, %v756
    %v1179 = vpack.c.b16 %v761, %v759
    %v1180 = vpack.c.b16 %v762, %v760
    %v1181 = vpack.c.b16 %v765, %v763
    %v1182 = vpack.c.b16 %v766, %v764
    %v1183 = vpack.c.b16 %v769, %v767
    %v1184 = vpack.c.b16 %v770, %v768
    %v1185 = vpack.c.b16 %v773, %v771
    %v1186 = vpack.c.b16 %v774, %v772
    %v1187 = vpack.c.b16 %v777, %v775
    %v1188 = vpack.c.b16 %v778, %v776
    %v1189 = vpack.c.b16 %v781, %v779
    %v1190 = vpack.c.b16 %v782, %v780
    %v1191 = vpack.c.b16 %v785, %v783
    %v1192 = vpack.c.b16 %v786, %v784
    %v1193 = vpack.c.b16 %v789, %v787
    %v1194 = vpack.c.b16 %v790, %v788
    %v1195 = vpack.c.b16 %v793, %v791
    %v1196 = vpack.c.b16 %v794, %v792
    %v1197 = vpack.c.b16 %v797, %v795
    %v1198 = vpack.c.b16 %v798, %v796
    %v1199 = vpack.c.b16 %v801, %v799
    %v1200 = vpack.c.b16 %v802, %v800
    %v1201 = vpack.c.b16 %v805, %v803
    %v1202 = vpack.c.b16 %v806, %v804
    %v1203 = vpack.c.b16 %v809, %v807
    %v1204 = vpack.c.b16 %v810, %v808
    %v1205 = vpack.c.b16 %v813, %v811
    %v1206 = vpack.c.b16 %v814, %v812
    %v1207 = vpack.c.b16 %v817, %v815
    %v1208 = vpack.c.b16 %v818, %v816
    %v1209 = vpack.c.b16 %v821, %v819
    %v1210 = vpack.c.b16 %v822, %v820
    %v1211 = vpack.c.b16 %v825, %v823
    %v1212 = vpack.c.b16 %v826, %v824
    %v1213 = vpack.c.b16 %v829, %v827
    %v1214 = vpack.c.b16 %v830, %v828
    %v1215 = vpack.c.b16 %v833, %v831
    %v1216 = vpack.c.b16 %v834, %v832
    %v1217 = vpack.c.b16 %v837, %v835
    %v1218 = vpack.c.b16 %v838, %v836
    %v1219 = vpack.c.b16 %v841, %v839
    %v1220 = vpack.c.b16 %v842, %v840
    %v1221 = vpack.c.b16 %v845, %v843
    %v1222 = vpack.c.b16 %v846, %v844
    %v1223 = vpack.c.b16 %v849, %v847
    %v1224 = vpack.c.b16 %v850, %v848
    %v1225 = vpack.c.b16 %v853, %v851
    %v1226 = vpack.c.b16 %v854, %v852
    %v1227 = vpack.c.b16 %v857, %v855
    %v1228 = vpack.c.b16 %v858, %v856
    %v1229 = vpack.c.b16 %v861, %v859
    %v1230 = vpack.c.b16 %v862, %v860
    %v1231 = vpack.c.b16 %v865, %v863
    %v1232 = vpack.c.b16 %v866, %v864
    %v1233 = vpack.c.b16 %v869, %v867
    %v1234 = vpack.c.b16 %v870, %v868
    %v1235 = vpack.c.b16 %v873, %v871
    %v1236 = vpack.c.b16 %v874, %v872
    %v1237 = vpack.c.b16 %v877, %v875
    %v1238 = vpack.c.b16 %v878, %v876
    %v1239 = vpack.c.b16 %v881, %v879
    %v1240 = vpack.c.b16 %v882, %v880
    %v1241 = vpack.c.b16 %v885, %v883
    %v1242 = vpack.c.b16 %v886, %v884
    %v1243 = vpack.c.b16 %v889, %v887
    %v1244 = vpack.c.b16 %v890, %v888
    %v1245 = vpack.c.b16 %v893, %v891
    %v1246 = vpack.c.b16 %v894, %v892
    %v1247 = vpack.c.b16 %v897, %v895
    %v1248 = vpack.c.b16 %v898, %v896
    %v1249 = vpack.c.b16 %v901, %v899
    %v1250 = vpack.c.b16 %v902, %v900
    %v1251 = vpack.c.b16 %v905, %v903
    %v1252 = vpack.c.b16 %v906, %v904
    %v1253 = vpack.c.b16 %v909, %v907
    %v1254 = vpack.c.b16 %v910, %v908
    %v1255 = vpack.c.b16 %v913, %v911
    %v1256 = vpack.c.b16 %v914, %v912
    %v1257 = vpack.c.b16 %v917, %v915
    %v1258 = vpack.c.b16 %v918, %v916
    %v1259 = vpack.c.b16 %v921, %v919
    %v1260 = vpack.c.b16 %v922, %v920
    %v1261 = vpack.c.b16 %v925, %v923
    %v1262 = vpack.c.b16 %v926, %v924
    %v1263 = vpack.c.b16 %v929, %v927
    %v1264 = vpack.c.b16 %v930, %v928
    %v1265 = vpack.c.b16 %v933, %v931
    %v1266 = vpack.c.b16 %v934, %v932
    %v1267 = vpack.c.b16 %v937, %v935
    %v1268 = vpack.c.b16 %v938, %v936
    %v1269 = vpack.c.b16 %v941, %v939
    %v1270 = vpack.c.b16 %v942, %v940
    %v1271 = vpack.c.b16 %v945, %v943
    %v1272 = vpack.c.b16 %v946, %v944
    %v1273 = vpack.c.b16 %v949, %v947
    %v1274 = vpack.c.b16 %v950, %v948
    %v1275 = vpack.c.b16 %v953, %v951
    %v1276 = vpack.c.b16 %v954, %v952
    %v1277 = vpack.c.b16 %v957, %v955
    %v1278 = vpack.c.b16 %v958, %v956
    %v1279 = vpack.c.b16 %v961, %v959
    %v1280 = vpack.c.b16 %v962, %v960
    %v1281 = vpack.c.b16 %v965, %v963
    %v1282 = vpack.c.b16 %v966, %v964
    %v1283 = vpack.c.b16 %v969, %v967
    %v1284 = vpack.c.b16 %v970, %v968
    %v1285 = vpack.c.b16 %v973, %v971
    %v1286 = vpack.c.b16 %v974, %v972
    %v1287 = vpack.c.b16 %v977, %v975
    %v1288 = vpack.c.b16 %v978, %v976
    %v1289 = vpack.c.b16 %v981, %v979
    %v1290 = vpack.c.b16 %v982, %v980
    %v1291 = vpack.c.b16 %v985, %v983
    %v1292 = vpack.c.b16 %v986, %v984
    %v1293 = vpack.c.b16 %v989, %v987
    %v1294 = vpack.c.b16 %v990, %v988
    %v1295 = vpack.c.b16 %v993, %v991
    %v1296 = vpack.c.b16 %v994, %v992
    %v1297 = vpack.c.b16 %v997, %v995
    %v1298 = vpack.c.b16 %v998, %v996
    %v1299 = vpack.c.b16 %v1001, %v999
    %v1300 = vpack.c.b16 %v1002, %v1000
    %v1301 = vpack.c.b16 %v1005, %v1003
    %v1302 = vpack.c.b16 %v1006, %v1004
    %v1303 = vpack.c.b16 %v1009, %v1007
    %v1304 = vpack.c.b16 %v1010, %v1008
    %v1305 = vpack.c.b16 %v1013, %v1011
    %v1306 = vpack.c.b16 %v1014, %v1012
    %v1307 = vpack.c.b16 %v1017, %v1015
    %v1308 = vpack.c.b16 %v1018, %v1016
    %v1309 = vpack.c.b16 %v1021, %v1019
    %v1310 = vpack.c.b16 %v1022, %v1020
    %v1311 = vpack.c.b16 %v1025, %v1023
    %v1312 = vpack.c.b16 %v1026, %v1024
    %v1313 = vpack.c.b16 %v1029, %v1027
    %v1314 = vpack.c.b16 %v1030, %v1028
    %v1315 = vpack.c.b16 %v1033, %v1031
    %v1316 = vpack.c.b16 %v1034, %v1032
    %v1317 = vpack.c.b16 %v1037, %v1035
    %v1318 = vpack.c.b16 %v1038, %v1036
    %v1319 = vpack.c.b16 %v1041, %v1039
    %v1320 = vpack.c.b16 %v1042, %v1040
    %v1321 = vpack.c.b16 %v1045, %v1043
    %v1322 = vpack.c.b16 %v1046, %v1044
    %v1323 = vpack.c.b16 %v1049, %v1047
    %v1324 = vpack.c.b16 %v1050, %v1048
    %v1325 = vpack.c.b16 %v1053, %v1051
    %v1326 = vpack.c.b16 %v1054, %v1052
    %v1327 = vpack.c.b16 %v1057, %v1055
    %v1328 = vpack.c.b16 %v1058, %v1056
    %v1329 = vpack.c.b16 %v1061, %v1059
    %v1330 = vpack.c.b16 %v1062, %v1060
    %v1331 = vpack.c.b16 %v1065, %v1063
    %v1332 = vpack.c.b16 %v1066, %v1064
    %v1333 = vpack.c.b16 %v1069, %v1067
    %v1334 = vpack.c.b16 %v1070, %v1068
    %v1335 = vpack.c.b16 %v1073, %v1071
    %v1336 = vpack.c.b16 %v1074, %v1072
    %v1337 = vpack.c.b16 %v1077, %v1075
    %v1338 = vpack.c.b16 %v1078, %v1076
    %v1339 = vpack.c.b16 %v1081, %v1079
    %v1340 = vpack.c.b16 %v1082, %v1080
    %v1341 = vpack.c.b16 %v1085, %v1083
    %v1342 = vpack.c.b16 %v1086, %v1084
    %v1343 = vpack.c.b16 %v1089, %v1087
    %v1344 = vpack.c.b16 %v1090, %v1088
    %v1345 = vpack.c.b16 %v1093, %v1091
    %v1346 = vpack.c.b16 %v1094, %v1092
    %vm1599 = vcmask 785408
    %v1601 = vsel %vm1599, %v74, 0
    %1603 = vmatprep.subr.bf16.mxu0 %v1096
    %1604 = vmatpush1.bf16.msra.mxu0 %v1095
    %1605 = vmatprep.subr.bf16.mxu0 %v1098
    %1606 = vmatpush1.bf16.msra.mxu0 %v1097
    %1607 = vmatprep.subr.bf16.mxu0 %v1100
    %1608 = vmatpush1.bf16.msra.mxu0 %v1099
    %1609 = vmatprep.subr.bf16.mxu0 %v1102
    %1610 = vmatpush1.bf16.msra.mxu0 %v1101
    %1611 = vmatprep.subr.bf16.mxu0 %v1104
    %1612 = vmatpush1.bf16.msra.mxu0 %v1103
    %1613 = vmatprep.subr.bf16.mxu0 %v1106
    %1614 = vmatpush1.bf16.msra.mxu0 %v1105
    %1615 = vmatprep.subr.bf16.mxu0 %v1108
    %1616 = vmatpush1.bf16.msra.mxu0 %v1107
    %1617 = vmatprep.subr.bf16.mxu0 %v1110
    %1618 = vmatpush1.bf16.msra.mxu0 %v1109
    %1619 = vmatprep.subr.bf16.mxu0 %v1112
    %1620 = vmatpush1.bf16.msra.mxu0 %v1111
    %1621 = vmatprep.subr.bf16.mxu0 %v1114
    %1622 = vmatpush1.bf16.msra.mxu0 %v1113
    %1623 = vmatprep.subr.bf16.mxu0 %v1116
    %1624 = vmatpush1.bf16.msra.mxu0 %v1115
    %1625 = vmatprep.subr.bf16.mxu0 %v1118
    %1626 = vmatpush1.bf16.msra.mxu0 %v1117
    %1627 = vmatprep.subr.bf16.mxu0 %v1120
    %1628 = vmatpush1.bf16.msra.mxu0 %v1119
    %1629 = vmatprep.subr.bf16.mxu0 %v1122
    %1630 = vmatpush1.bf16.msra.mxu0 %v1121
    %1631 = vmatprep.subr.bf16.mxu0 %v1124
    %1632 = vmatpush1.bf16.msra.mxu0 %v1123
    %1633 = vmatprep.subr.bf16.mxu0 %v1126
    %1634 = vmatpush1.bf16.msra.mxu0 %v1125
    %1635 = vmatprep.mubr.bf16.mxu0 %v60
    %1636 = vmatmul.mubr.bf16.gmra.mrb[0].mxu0 %v59
    %v1637 = vpop.f32.mrb[0].mxu0
    %v1638 = vadd.f32 %v332, %v1637
    %v1639 = vpop.f32.mrb[0].mxu0
    %v1640 = vadd.f32 %v336, %v1639
    %v1641 = vpop.f32.mrb[0].mxu0
    %v1642 = vpop.f32.mrb[0].mxu0
    %1643 = vdwg.mxu0
    %1644 = vmatprep.subr.bf16.mxu0 %v1128
    %1645 = vmatpush1.bf16.msra.mxu0 %v1127
    %1646 = vmatprep.subr.bf16.mxu0 %v1130
    %1647 = vmatpush1.bf16.msra.mxu0 %v1129
    %1648 = vmatprep.subr.bf16.mxu0 %v1132
    %1649 = vmatpush1.bf16.msra.mxu0 %v1131
    %1650 = vmatprep.subr.bf16.mxu0 %v1134
    %1651 = vmatpush1.bf16.msra.mxu0 %v1133
    %1652 = vmatprep.subr.bf16.mxu0 %v1136
    %1653 = vmatpush1.bf16.msra.mxu0 %v1135
    %1654 = vmatprep.subr.bf16.mxu0 %v1138
    %1655 = vmatpush1.bf16.msra.mxu0 %v1137
    %1656 = vmatprep.subr.bf16.mxu0 %v1140
    %1657 = vmatpush1.bf16.msra.mxu0 %v1139
    %1658 = vmatprep.subr.bf16.mxu0 %v1142
    %1659 = vmatpush1.bf16.msra.mxu0 %v1141
    %1660 = vmatprep.subr.bf16.mxu0 %v1144
    %1661 = vmatpush1.bf16.msra.mxu0 %v1143
    %1662 = vmatprep.subr.bf16.mxu0 %v1146
    %1663 = vmatpush1.bf16.msra.mxu0 %v1145
    %1664 = vmatprep.subr.bf16.mxu0 %v1148
    %1665 = vmatpush1.bf16.msra.mxu0 %v1147
    %1666 = vmatprep.subr.bf16.mxu0 %v1150
    %1667 = vmatpush1.bf16.msra.mxu0 %v1149
    %1668 = vmatprep.subr.bf16.mxu0 %v1152
    %1669 = vmatpush1.bf16.msra.mxu0 %v1151
    %1670 = vmatprep.subr.bf16.mxu0 %v1154
    %1671 = vmatpush1.bf16.msra.mxu0 %v1153
    %1672 = vmatprep.subr.bf16.mxu0 %v1156
    %1673 = vmatpush1.bf16.msra.mxu0 %v1155
    %1674 = vmatprep.subr.bf16.mxu0 %v1158
    %1675 = vmatpush1.bf16.msra.mxu0 %v1157
    %1676 = vmatprep.mubr.bf16.mxu0 %v62
    %1677 = vmatmul.mubr.bf16.gmra.mrb[0].mxu0 %v61
    %v1678 = vpop.f32.mrb[0].mxu0
    %v1679 = vadd.f32 %v1638, %v1678
    %v1680 = vpop.f32.mrb[0].mxu0
    %v1681 = vadd.f32 %v1640, %v1680
    %v1682 = vpop.f32.mrb[0].mxu0
    %v1683 = vpop.f32.mrb[0].mxu0
    %1684 = vdwg.mxu0
    %1685 = vmatprep.subr.bf16.mxu0 %v1160
    %1686 = vmatpush1.bf16.msra.mxu0 %v1159
    %1687 = vmatprep.subr.bf16.mxu0 %v1162
    %1688 = vmatpush1.bf16.msra.mxu0 %v1161
    %1689 = vmatprep.subr.bf16.mxu0 %v1164
    %1690 = vmatpush1.bf16.msra.mxu0 %v1163
    %1691 = vmatprep.subr.bf16.mxu0 %v1166
    %1692 = vmatpush1.bf16.msra.mxu0 %v1165
    %1693 = vmatprep.subr.bf16.mxu0 %v1168
    %1694 = vmatpush1.bf16.msra.mxu0 %v1167
    %1695 = vmatprep.subr.bf16.mxu0 %v1170
    %1696 = vmatpush1.bf16.msra.mxu0 %v1169
    %1697 = vmatprep.subr.bf16.mxu0 %v1172
    %1698 = vmatpush1.bf16.msra.mxu0 %v1171
    %1699 = vmatprep.subr.bf16.mxu0 %v1174
    %1700 = vmatpush1.bf16.msra.mxu0 %v1173
    %1701 = vmatprep.subr.bf16.mxu0 %v1176
    %1702 = vmatpush1.bf16.msra.mxu0 %v1175
    %1703 = vmatprep.subr.bf16.mxu0 %v1178
    %1704 = vmatpush1.bf16.msra.mxu0 %v1177
    %1705 = vmatprep.subr.bf16.mxu0 %v1180
    %1706 = vmatpush1.bf16.msra.mxu0 %v1179
    %1707 = vmatprep.subr.bf16.mxu0 %v1182
    %1708 = vmatpush1.bf16.msra.mxu0 %v1181
    %1709 = vmatprep.subr.bf16.mxu0 %v1184
    %1710 = vmatpush1.bf16.msra.mxu0 %v1183
    %1711 = vmatprep.subr.bf16.mxu0 %v1186
    %1712 = vmatpush1.bf16.msra.mxu0 %v1185
    %1713 = vmatprep.subr.bf16.mxu0 %v1188
    %1714 = vmatpush1.bf16.msra.mxu0 %v1187
    %1715 = vmatprep.subr.bf16.mxu0 %v1190
    %1716 = vmatpush1.bf16.msra.mxu0 %v1189
    %1717 = vmatprep.mubr.bf16.mxu0 %v64
    %1718 = vmatmul.mubr.bf16.gmra.mrb[0].mxu0 %v63
    %v1719 = vpop.f32.mrb[0].mxu0
    %v1720 = vadd.f32 %v1679, %v1719
    %v1721 = vpop.f32.mrb[0].mxu0
    %v1722 = vadd.f32 %v1681, %v1721
    %v1723 = vpop.f32.mrb[0].mxu0
    %v1724 = vpop.f32.mrb[0].mxu0
    %1725 = vdwg.mxu0
    %1726 = vmatprep.subr.bf16.mxu0 %v1192
    %1727 = vmatpush1.bf16.msra.mxu0 %v1191
    %1728 = vmatprep.subr.bf16.mxu0 %v1194
    %1729 = vmatpush1.bf16.msra.mxu0 %v1193
    %1730 = vmatprep.subr.bf16.mxu0 %v1196
    %1731 = vmatpush1.bf16.msra.mxu0 %v1195
    %1732 = vmatprep.subr.bf16.mxu0 %v1198
    %1733 = vmatpush1.bf16.msra.mxu0 %v1197
    %1734 = vmatprep.subr.bf16.mxu0 %v1200
    %1735 = vmatpush1.bf16.msra.mxu0 %v1199
    %1736 = vmatprep.subr.bf16.mxu0 %v1202
    %1737 = vmatpush1.bf16.msra.mxu0 %v1201
    %1738 = vmatprep.subr.bf16.mxu0 %v1204
    %1739 = vmatpush1.bf16.msra.mxu0 %v1203
    %1740 = vmatprep.subr.bf16.mxu0 %v1206
    %1741 = vmatpush1.bf16.msra.mxu0 %v1205
    %1742 = vmatprep.subr.bf16.mxu0 %v1208
    %1743 = vmatpush1.bf16.msra.mxu0 %v1207
    %1744 = vmatprep.subr.bf16.mxu0 %v1210
    %1745 = vmatpush1.bf16.msra.mxu0 %v1209
    %1746 = vmatprep.subr.bf16.mxu0 %v1212
    %1747 = vmatpush1.bf16.msra.mxu0 %v1211
    %1748 = vmatprep.subr.bf16.mxu0 %v1214
    %1749 = vmatpush1.bf16.msra.mxu0 %v1213
    %1750 = vmatprep.subr.bf16.mxu0 %v1216
    %1751 = vmatpush1.bf16.msra.mxu0 %v1215
    %1752 = vmatprep.subr.bf16.mxu0 %v1218
    %1753 = vmatpush1.bf16.msra.mxu0 %v1217
    %1754 = vmatprep.subr.bf16.mxu0 %v1220
    %1755 = vmatpush1.bf16.msra.mxu0 %v1219
    %1756 = vmatprep.subr.bf16.mxu0 %v1222
    %1757 = vmatpush1.bf16.msra.mxu0 %v1221
    %1758 = vmatprep.mubr.bf16.mxu0 %v66
    %1759 = vmatmul.mubr.bf16.gmra.mrb[0].mxu0 %v65
    %v1760 = vpop.f32.mrb[0].mxu0
    %v1761 = vadd.f32 %v1720, %v1760
    %v1762 = vpop.f32.mrb[0].mxu0
    %v1763 = vadd.f32 %v1722, %v1762
    %v1764 = vpop.f32.mrb[0].mxu0
    %v1765 = vpop.f32.mrb[0].mxu0
    %1766 = vdwg.mxu0
    %1767 = vmatprep.subr.bf16.mxu0 %v1224
    %1768 = vmatpush1.bf16.msra.mxu0 %v1223
    %1769 = vmatprep.subr.bf16.mxu0 %v1226
    %1770 = vmatpush1.bf16.msra.mxu0 %v1225
    %1771 = vmatprep.subr.bf16.mxu0 %v1228
    %1772 = vmatpush1.bf16.msra.mxu0 %v1227
    %1773 = vmatprep.subr.bf16.mxu0 %v1230
    %1774 = vmatpush1.bf16.msra.mxu0 %v1229
    %1775 = vmatprep.subr.bf16.mxu0 %v1232
    %1776 = vmatpush1.bf16.msra.mxu0 %v1231
    %1777 = vmatprep.subr.bf16.mxu0 %v1234
    %1778 = vmatpush1.bf16.msra.mxu0 %v1233
    %1779 = vmatprep.subr.bf16.mxu0 %v1236
    %1780 = vmatpush1.bf16.msra.mxu0 %v1235
    %1781 = vmatprep.subr.bf16.mxu0 %v1238
    %1782 = vmatpush1.bf16.msra.mxu0 %v1237
    %1783 = vmatprep.subr.bf16.mxu0 %v1240
    %1784 = vmatpush1.bf16.msra.mxu0 %v1239
    %1785 = vmatprep.subr.bf16.mxu0 %v1242
    %1786 = vmatpush1.bf16.msra.mxu0 %v1241
    %1787 = vmatprep.subr.bf16.mxu0 %v1244
    %1788 = vmatpush1.bf16.msra.mxu0 %v1243
    %1789 = vmatprep.subr.bf16.mxu0 %v1246
    %1790 = vmatpush1.bf16.msra.mxu0 %v1245
    %1791 = vmatprep.subr.bf16.mxu0 %v1248
    %1792 = vmatpush1.bf16.msra.mxu0 %v1247
    %1793 = vmatprep.subr.bf16.mxu0 %v1250
    %1794 = vmatpush1.bf16.msra.mxu0 %v1249
    %1795 = vmatprep.subr.bf16.mxu0 %v1252
    %1796 = vmatpush1.bf16.msra.mxu0 %v1251
    %1797 = vmatprep.subr.bf16.mxu0 %v1254
    %1798 = vmatpush1.bf16.msra.mxu0 %v1253
    %1799 = vmatprep.mubr.bf16.mxu0 %v68
    %1800 = vmatmul.mubr.bf16.gmra.mrb[0].mxu0 %v67
    %v1801 = vpop.f32.mrb[0].mxu0
    %v1802 = vadd.f32 %v1761, %v1801
    %v1803 = vpop.f32.mrb[0].mxu0
    %v1804 = vadd.f32 %v1763, %v1803
    %v1805 = vpop.f32.mrb[0].mxu0
    %v1806 = vpop.f32.mrb[0].mxu0
    %1807 = vdwg.mxu0
    %1808 = vmatprep.subr.bf16.mxu0 %v1256
    %1809 = vmatpush1.bf16.msra.mxu0 %v1255
    %1810 = vmatprep.subr.bf16.mxu0 %v1258
    %1811 = vmatpush1.bf16.msra.mxu0 %v1257
    %1812 = vmatprep.subr.bf16.mxu0 %v1260
    %1813 = vmatpush1.bf16.msra.mxu0 %v1259
    %1814 = vmatprep.subr.bf16.mxu0 %v1262
    %1815 = vmatpush1.bf16.msra.mxu0 %v1261
    %1816 = vmatprep.subr.bf16.mxu0 %v1264
    %1817 = vmatpush1.bf16.msra.mxu0 %v1263
    %1818 = vmatprep.subr.bf16.mxu0 %v1266
    %1819 = vmatpush1.bf16.msra.mxu0 %v1265
    %1820 = vmatprep.subr.bf16.mxu0 %v1268
    %1821 = vmatpush1.bf16.msra.mxu0 %v1267
    %1822 = vmatprep.subr.bf16.mxu0 %v1270
    %1823 = vmatpush1.bf16.msra.mxu0 %v1269
    %1824 = vmatprep.subr.bf16.mxu0 %v1272
    %1825 = vmatpush1.bf16.msra.mxu0 %v1271
    %1826 = vmatprep.subr.bf16.mxu0 %v1274
    %1827 = vmatpush1.bf16.msra.mxu0 %v1273
    %1828 = vmatprep.subr.bf16.mxu0 %v1276
    %1829 = vmatpush1.bf16.msra.mxu0 %v1275
    %1830 = vmatprep.subr.bf16.mxu0 %v1278
    %1831 = vmatpush1.bf16.msra.mxu0 %v1277
    %1832 = vmatprep.subr.bf16.mxu0 %v1280
    %1833 = vmatpush1.bf16.msra.mxu0 %v1279
    %1834 = vmatprep.subr.bf16.mxu0 %v1282
    %1835 = vmatpush1.bf16.msra.mxu0 %v1281
    %1836 = vmatprep.subr.bf16.mxu0 %v1284
    %1837 = vmatpush1.bf16.msra.mxu0 %v1283
    %1838 = vmatprep.subr.bf16.mxu0 %v1286
    %1839 = vmatpush1.bf16.msra.mxu0 %v1285
    %1840 = vmatprep.mubr.bf16.mxu0 %v70
    %1841 = vmatmul.mubr.bf16.gmra.mrb[0].mxu0 %v69
    %v1842 = vpop.f32.mrb[0].mxu0
    %v1843 = vadd.f32 %v1802, %v1842
    %v1844 = vpop.f32.mrb[0].mxu0
    %v1845 = vadd.f32 %v1804, %v1844
    %v1846 = vpop.f32.mrb[0].mxu0
    %v1847 = vpop.f32.mrb[0].mxu0
    %1848 = vdwg.mxu0
    %1849 = vmatprep.subr.bf16.mxu0 %v1288
    %1850 = vmatpush1.bf16.msra.mxu0 %v1287
    %1851 = vmatprep.subr.bf16.mxu0 %v1290
    %1852 = vmatpush1.bf16.msra.mxu0 %v1289
    %1853 = vmatprep.subr.bf16.mxu0 %v1292
    %1854 = vmatpush1.bf16.msra.mxu0 %v1291
    %1855 = vmatprep.subr.bf16.mxu0 %v1294
    %1856 = vmatpush1.bf16.msra.mxu0 %v1293
    %1857 = vmatprep.subr.bf16.mxu0 %v1296
    %1858 = vmatpush1.bf16.msra.mxu0 %v1295
    %1859 = vmatprep.subr.bf16.mxu0 %v1298
    %1860 = vmatpush1.bf16.msra.mxu0 %v1297
    %1861 = vmatprep.subr.bf16.mxu0 %v1300
    %1862 = vmatpush1.bf16.msra.mxu0 %v1299
    %1863 = vmatprep.subr.bf16.mxu0 %v1302
    %1864 = vmatpush1.bf16.msra.mxu0 %v1301
    %1865 = vmatprep.subr.bf16.mxu0 %v1304
    %1866 = vmatpush1.bf16.msra.mxu0 %v1303
    %1867 = vmatprep.subr.bf16.mxu0 %v1306
    %1868 = vmatpush1.bf16.msra.mxu0 %v1305
    %1869 = vmatprep.subr.bf16.mxu0 %v1308
    %1870 = vmatpush1.bf16.msra.mxu0 %v1307
    %1871 = vmatprep.subr.bf16.mxu0 %v1310
    %1872 = vmatpush1.bf16.msra.mxu0 %v1309
    %1873 = vmatprep.subr.bf16.mxu0 %v1312
    %1874 = vmatpush1.bf16.msra.mxu0 %v1311
    %1875 = vmatprep.subr.bf16.mxu0 %v1314
    %1876 = vmatpush1.bf16.msra.mxu0 %v1313
    %1877 = vmatprep.subr.bf16.mxu0 %v1316
    %1878 = vmatpush1.bf16.msra.mxu0 %v1315
    %1879 = vmatprep.subr.bf16.mxu0 %v1318
    %1880 = vmatpush1.bf16.msra.mxu0 %v1317
    %1881 = vmatprep.mubr.bf16.mxu0 %v72
    %1882 = vmatmul.mubr.bf16.gmra.mrb[0].mxu0 %v71
    %v1883 = vpop.f32.mrb[0].mxu0
    %v1884 = vadd.f32 %v1843, %v1883
    %v1885 = vpop.f32.mrb[0].mxu0
    %v1886 = vadd.f32 %v1845, %v1885
    %v1887 = vpop.f32.mrb[0].mxu0
    %v1888 = vpop.f32.mrb[0].mxu0
    %1889 = vdwg.mxu0
    %1890 = vmatprep.subr.bf16.mxu0 %v1320
    %1891 = vmatpush1.bf16.msra.mxu0 %v1319
    %1892 = vmatprep.subr.bf16.mxu0 %v1322
    %1893 = vmatpush1.bf16.msra.mxu0 %v1321
    %1894 = vmatprep.subr.bf16.mxu0 %v1324
    %1895 = vmatpush1.bf16.msra.mxu0 %v1323
    %1896 = vmatprep.subr.bf16.mxu0 %v1326
    %1897 = vmatpush1.bf16.msra.mxu0 %v1325
    %1898 = vmatprep.subr.bf16.mxu0 %v1328
    %1899 = vmatpush1.bf16.msra.mxu0 %v1327
    %1900 = vmatprep.subr.bf16.mxu0 %v1330
    %1901 = vmatpush1.bf16.msra.mxu0 %v1329
    %1902 = vmatprep.subr.bf16.mxu0 %v1332
    %1903 = vmatpush1.bf16.msra.mxu0 %v1331
    %1904 = vmatprep.subr.bf16.mxu0 %v1334
    %1905 = vmatpush1.bf16.msra.mxu0 %v1333
    %1906 = vmatprep.subr.bf16.mxu0 %v1336
    %1907 = vmatpush1.bf16.msra.mxu0 %v1335
    %1908 = vmatprep.subr.bf16.mxu0 %v1338
    %1909 = vmatpush1.bf16.msra.mxu0 %v1337
    %1910 = vmatprep.subr.bf16.mxu0 %v1340
    %1911 = vmatpush1.bf16.msra.mxu0 %v1339
    %1912 = vmatprep.subr.bf16.mxu0 %v1342
    %1913 = vmatpush1.bf16.msra.mxu0 %v1341
    %1914 = vmatprep.subr.bf16.mxu0 %v1344
    %1915 = vmatpush1.bf16.msra.mxu0 %v1343
    %1916 = vmatprep.subr.bf16.mxu0 %v1346
    %1917 = vmatpush1.bf16.msra.mxu0 %v1345
    %1918 = vmatprep.subr.bf16.mxu0 0
    %1919 = vmatpush1.bf16.msra.mxu0 0
    %1920 = vmatprep.subr.bf16.mxu0 0
    %1921 = vmatpush1.bf16.msra.mxu0 0
    %1922 = vmatprep.mubr.bf16.mxu0 %v1601
    %1923 = vmatmul.mubr.bf16.gmra.mrb[0].mxu0 %v73
    %v1924 = vpop.f32.mrb[0].mxu0
    %v1925 = vadd.f32 %v1884, %v1924
    %v1926 = vpop.f32.mrb[0].mxu0
    %v1927 = vadd.f32 %v1886, %v1926
    %v1928 = vpop.f32.mrb[0].mxu0
    %v1929 = vpop.f32.mrb[0].mxu0
    %1930 = vdwg.mxu0
    %v1931 = vmax.f32 %v1925, 0.0
    %v1932 = vmax.f32 %v1927, 0.0
    %v1933 = vpack.c.bf16 %v1931, %v1931
    %v1934 = vpack.c.bf16 %v1932, %v1932
    %v1935 = vld [vmem:[%s3] sm:$0xf]
    %v1936 = vld [vmem:[%s3 + $0x4] sm:$0xf]
    %v1937 = vld [vmem:[%s3 + $0x8] sm:$0xf]
    %v1938 = vld [vmem:[%s3 + $0xc] sm:$0xf]
    %v1939 = vld [vmem:[%s3 + $0x10] sm:$0xf]
    %v1940 = vld [vmem:[%s3 + $0x14] sm:$0xf]
    %v1941 = vld [vmem:[%s3 + $0x18] sm:$0xf]
    %v1942 = vld [vmem:[%s3 + $0x1c] sm:$0xf]
    %v1943 = vld [vmem:[%s3 + $0x20] sm:$0xf]
    %v1944 = vld [vmem:[%s3 + $0x24] sm:$0xf]
    %v1945 = vld [vmem:[%s3 + $0x28] sm:$0xf]
    %v1946 = vld [vmem:[%s3 + $0x2c] sm:$0xf]
    %v1947 = vld [vmem:[%s3 + $0x30] sm:$0xf]
    %v1948 = vld [vmem:[%s3 + $0x34] sm:$0xf]
    %v1949 = vld [vmem:[%s3 + $0x38] sm:$0xf]
    %v1950 = vld [vmem:[%s3 + $0x3c] sm:$0xf]
    %v1951 = vld [vmem:[%s3 + $0x40] sm:$0xf]
    %v1952 = vld [vmem:[%s3 + $0x44] sm:$0xf]
    %v1953 = vld [vmem:[%s3 + $0x48] sm:$0xf]
    %v1954 = vld [vmem:[%s3 + $0x4c] sm:$0xf]
    %v1955 = vld [vmem:[%s3 + $0x50] sm:$0xf]
    %v1956 = vld [vmem:[%s3 + $0x54] sm:$0xf]
    %v1957 = vld [vmem:[%s3 + $0x58] sm:$0xf]
    %v1958 = vld [vmem:[%s3 + $0x5c] sm:$0xf]
    %v1959 = vld [vmem:[%s3 + $0x60] sm:$0xf]
    %v1960 = vld [vmem:[%s3 + $0x64] sm:$0xf]
    %v1961 = vld [vmem:[%s3 + $0x68] sm:$0xf]
    %v1962 = vld [vmem:[%s3 + $0x6c] sm:$0xf]
    %v1963 = vld [vmem:[%s3 + $0x70] sm:$0xf]
    %v1964 = vld [vmem:[%s3 + $0x74] sm:$0xf]
    %v1965 = vld [vmem:[%s3 + $0x78] sm:$0xf]
    %v1966 = vld [vmem:[%s3 + $0x7c] sm:$0xf]
    %v1967 = vld [vmem:[%s4] sm:$0x1]
    %v1969 = vlaneseq
    %v1970 = vshrl.u32 %v1969, 7
    %v1971 = vsub.s32 0, %v1970
    %v1972 = vrot.slane %v1967, %v1971
    %v2006 = vunpack.c.l.b16 %v1935
    %v2007 = vunpack.c.l.b16 %v1936
    %v2008 = vunpack.c.l.b16 %v1937
    %v2009 = vunpack.c.l.b16 %v1938
    %v2010 = vunpack.c.l.b16 %v1939
    %v2011 = vunpack.c.l.b16 %v1940
    %v2012 = vunpack.c.l.b16 %v1941
    %v2013 = vunpack.c.l.b16 %v1942
    %v2014 = vunpack.c.l.b16 %v1943
    %v2015 = vunpack.c.l.b16 %v1944
    %v2016 = vunpack.c.l.b16 %v1945
    %v2017 = vunpack.c.l.b16 %v1946
    %v2018 = vunpack.c.l.b16 %v1947
    %v2019 = vunpack.c.l.b16 %v1948
    %v2020 = vunpack.c.l.b16 %v1949
    %v2021 = vunpack.c.l.b16 %v1950
    %v2022 = vunpack.c.l.b16 %v1951
    %v2023 = vunpack.c.l.b16 %v1952
    %v2024 = vunpack.c.l.b16 %v1953
    %v2025 = vunpack.c.l.b16 %v1954
    %v2026 = vunpack.c.l.b16 %v1955
    %v2027 = vunpack.c.l.b16 %v1956
    %v2028 = vunpack.c.l.b16 %v1957
    %v2029 = vunpack.c.l.b16 %v1958
    %v2030 = vunpack.c.l.b16 %v1959
    %v2031 = vunpack.c.l.b16 %v1960
    %v2032 = vunpack.c.l.b16 %v1961
    %v2033 = vunpack.c.l.b16 %v1962
    %v2034 = vunpack.c.l.b16 %v1963
    %v2035 = vunpack.c.l.b16 %v1964
    %v2036 = vunpack.c.l.b16 %v1965
    %v2037 = vunpack.c.l.b16 %v1966
    %v2038 = vpack.c.b16 %v2007, %v2006
    %v2039 = vpack.c.b16 %v2009, %v2008
    %v2040 = vpack.c.b16 %v2011, %v2010
    %v2041 = vpack.c.b16 %v2013, %v2012
    %v2042 = vpack.c.b16 %v2015, %v2014
    %v2043 = vpack.c.b16 %v2017, %v2016
    %v2044 = vpack.c.b16 %v2019, %v2018
    %v2045 = vpack.c.b16 %v2021, %v2020
    %v2046 = vpack.c.b16 %v2023, %v2022
    %v2047 = vpack.c.b16 %v2025, %v2024
    %v2048 = vpack.c.b16 %v2027, %v2026
    %v2049 = vpack.c.b16 %v2029, %v2028
    %v2050 = vpack.c.b16 %v2031, %v2030
    %v2051 = vpack.c.b16 %v2033, %v2032
    %v2052 = vpack.c.b16 %v2035, %v2034
    %v2053 = vpack.c.b16 %v2037, %v2036
    %2070 = vmatprep.subr.bf16.mxu0 0
    %2071 = vmatpush1.bf16.msra.mxu0 %v2038
    %2072 = vmatprep.subr.bf16.mxu0 0
    %2073 = vmatpush1.bf16.msra.mxu0 %v2039
    %2074 = vmatprep.subr.bf16.mxu0 0
    %2075 = vmatpush1.bf16.msra.mxu0 %v2040
    %2076 = vmatprep.subr.bf16.mxu0 0
    %2077 = vmatpush1.bf16.msra.mxu0 %v2041
    %2078 = vmatprep.subr.bf16.mxu0 0
    %2079 = vmatpush1.bf16.msra.mxu0 %v2042
    %2080 = vmatprep.subr.bf16.mxu0 0
    %2081 = vmatpush1.bf16.msra.mxu0 %v2043
    %2082 = vmatprep.subr.bf16.mxu0 0
    %2083 = vmatpush1.bf16.msra.mxu0 %v2044
    %2084 = vmatprep.subr.bf16.mxu0 0
    %2085 = vmatpush1.bf16.msra.mxu0 %v2045
    %2086 = vmatprep.subr.bf16.mxu0 0
    %2087 = vmatpush1.bf16.msra.mxu0 %v2046
    %2088 = vmatprep.subr.bf16.mxu0 0
    %2089 = vmatpush1.bf16.msra.mxu0 %v2047
    %2090 = vmatprep.subr.bf16.mxu0 0
    %2091 = vmatpush1.bf16.msra.mxu0 %v2048
    %2092 = vmatprep.subr.bf16.mxu0 0
    %2093 = vmatpush1.bf16.msra.mxu0 %v2049
    %2094 = vmatprep.subr.bf16.mxu0 0
    %2095 = vmatpush1.bf16.msra.mxu0 %v2050
    %2096 = vmatprep.subr.bf16.mxu0 0
    %2097 = vmatpush1.bf16.msra.mxu0 %v2051
    %2098 = vmatprep.subr.bf16.mxu0 0
    %2099 = vmatpush1.bf16.msra.mxu0 %v2052
    %2100 = vmatprep.subr.bf16.mxu0 0
    %2101 = vmatpush1.bf16.msra.mxu0 %v2053
    %2102 = vmatprep.mubr.bf16.mxu0 %v1934
    %2103 = vmatmul.mubr.bf16.gmra.mrb[0].mxu0 %v1933
    %v2104 = vpop.f32.mrb[0].mxu0
    %v2105 = vadd.f32 %v1972, %v2104
    %v2106 = vpop.f32.mrb[0].mxu0
    %v2107 = vpop.f32.mrb[0].mxu0
    %v2108 = vpop.f32.mrb[0].mxu0
    %2109 = vdwg.mxu0
    %v2110 = vmax.f32 %v2105, 0.0
    %v2111 = vld [vmem:[%s5] sm:$0x1]
    %v2113 = vlaneseq
    %v2114 = vshrl.u32 %v2113, 7
    %v2115 = vsub.s32 0, %v2114
    %v2116 = vrot.slane %v2111, %v2115
    %v2118 = vmul.f32 %v2110, %v2116
    %vm2119 = vcmask 523264
    %v2120 = vsel %vm2119, %v2118, 0.0
    %2121 = vadd.xlane.f32.xlu0 %v2120
    %v2122 = vpop.xlane.xlu0 %2121
    %v2123 = vld [vmem:[#allocation2] sm:$0x1]
    %v2125 = vlaneseq
    %v2126 = vshrl.u32 %v2125, 7
    %v2127 = vsub.s32 0, %v2126
    %v2128 = vrot.slane %v2123, %v2127
    %v2130 = vadd.f32 %v2122, %v2128
    %vm2131 = vcmask 7168
    %2132 = vst.msk [vmem:[%s7] sm:$0xff] %vm2131, %v2130
    // Predicated region
    $region34: #{binary_classification_forward.1} parent=1 // pred_check
      _
    $region35: #{binary_classification_forward.1} parent=1 // pred_check_branch
      %2134 = sbr.rel (0) target = $region37
    $region36: #{binary_classification_forward.1} parent=1 // pred_region
      _
    $region37: #{binary_classification_forward.1} parent=1 // pred_fallthru
      _
    // Predicated region
    $region38: #{binary_classification_forward.1} parent=1 // pred_check
      _
    $region39: #{binary_classification_forward.1} parent=1 // pred_check_branch
      %2136 = sbr.rel (0) target = $region41
    $region40: #{binary_classification_forward.1} parent=1 // pred_region
      _
    $region41: #{binary_classification_forward.1} parent=1 // pred_fallthru
      _
    %2137 = vsyncpa [#allocation4], 1

</llo_original>
